<compile_context>
chip_gen: v7x
topology: tpu7x:2x2x1
jax: 0.10.0
libtpu: 0.0.40
codegen_flags: <defaults>
</compile_context>

<pallas_src>
import jax
import jax.numpy as jnp
from jax.experimental import pallas as pl
from jax.experimental.pallas import tpu as pltpu

# Lane-aligned (padded) layer widths: 784->896, 64->128, 10->128.
DIMS_PAD = (896, 512, 256, 128, 128, 128)
# Cumulative offsets of each layer's bias inside the packed (1, 1152) bias array.
BIAS_OFF = (0, 512, 768, 896, 1024, 1152)


def mlp_kernel(x_ref, w1_ref, w2_ref, w3_ref, w4_ref, w5_ref, b_ref, o_ref):
    """One batch tile: 5 matmuls on the MXU (bf16 inputs, f32 accumulation),
    bias add + ReLU on the VPU in f32. Weights/biases are grid-resident."""
    w_refs = (w1_ref, w2_ref, w3_ref, w4_ref, w5_ref)
    cdt = w1_ref.dtype  # MXU input dtype (bf16 by default)

    h = x_ref[...]  # (TM, 896) f32
    for li, w_ref in enumerate(w_refs):
        b = b_ref[:, BIAS_OFF[li]:BIAS_OFF[li + 1]]          # (1, Npad) f32
        h = jnp.dot(h.astype(cdt), w_ref[...],
                    preferred_element_type=jnp.float32) + b   # f32 accum + bias
        if li < len(w_refs) - 1:
            h = jnp.maximum(h, 0.0)                           # ReLU (VPU, f32)
    o_ref[...] = h.astype(o_ref.dtype)


def mymodel_forward(x_nchw, params, *, weights_dtype=jnp.bfloat16, tm=128):
    """x_nchw: (B, 1, 28, 28) float32.  params: list of (W_(in,out), b) pairs."""
    B = x_nchw.shape[0]
    n_out = params[-1][0].shape[1]  # 10

    # Same semantics as torch .view(-1, 784); then lane-align K: 784 -> 896.
    x = x_nchw.reshape(B, 784).astype(jnp.float32)
    x = jnp.pad(x, ((0, 0), (0, DIMS_PAD[0] - 784)))

    # Batch tile (full sublane tiles); pad the batch so it divides evenly.
    # TM=128 fills a systolic pass on all generations (v6e/v7x could use 256).
    TM = tm if B >= tm else max(8, -(-B // 8) * 8)
    Bp = -(-B // TM) * TM
    if Bp != B:
        x = jnp.pad(x, ((0, Bp - B), (0, 0)))

    # Zero-pad weights/biases to the lane-aligned dims; weights -> bf16,
    # biases stay f32 and are packed into a single (1, 1152) operand.
    ws, bs = [], []
    for li, (w, b) in enumerate(params):
        din, dout = w.shape
        dpi, dpo = DIMS_PAD[li], DIMS_PAD[li + 1]
        w_p = jnp.zeros((dpi, dpo), jnp.float32).at[:din, :dout].set(w)
        b_p = jnp.zeros((dpo,), jnp.float32).at[:dout].set(b)
        ws.append(w_p.astype(weights_dtype))
        bs.append(b_p)
    b_packed = jnp.concatenate(bs).reshape(1, -1)  # (1, 1152) f32

    grid = (Bp // TM,)
    in_specs = [pl.BlockSpec((TM, DIMS_PAD[0]), lambda i: (i, 0))]          # x tile
    in_specs += [pl.BlockSpec(w.shape, lambda i: (0, 0)) for w in ws]       # resident
    in_specs += [pl.BlockSpec(b_packed.shape, lambda i: (0, 0))]            # resident

    out = pl.pallas_call(
        mlp_kernel,
        out_shape=jax.ShapeDtypeStruct((Bp, DIMS_PAD[-1]), jnp.float32),
        grid=grid,
        in_specs=in_specs,
        out_specs=pl.BlockSpec((TM, DIMS_PAD[-1]), lambda i: (i, 0)),
        compiler_params=pltpu.CompilerParams(
            dimension_semantics=("parallel",),  # shard batch across TCs (v7x)
        ),
    )(x, *ws, b_packed)

    return out[:B, :n_out]


def init_params(key):
    """Deterministic synthetic init matching nn.Linear shapes (stored as (in, out))."""
    dims = [784, 512, 256, 128, 64, 10]
    params = []
    for i in range(len(dims) - 1):
        fan_in, fan_out = dims[i], dims[i + 1]
        key, kw, kb = jax.random.split(key, 3)
        bound = 1.0 / jnp.sqrt(fan_in)
        w = jax.random.uniform(kw, (fan_in, fan_out), jnp.float32, -bound, bound)
        b = jax.random.uniform(kb, (fan_out,), jnp.float32, -bound, bound)
        params.append((w, b))
    return params


def reference_forward(x_nchw, params, weights_dtype=jnp.bfloat16):
    """Pure-JAX reference with the same bf16-matmul / f32-accumulate numerics."""
    x = x_nchw.reshape(x_nchw.shape[0], 784).astype(jnp.float32)
    for i, (w, b) in enumerate(params):
        h = jnp.dot(x.astype(weights_dtype), w.astype(weights_dtype),
                    preferred_element_type=jnp.float32) + b
        x = jnp.maximum(h, 0.0) if i < len(params) - 1 else h
    return x


if __name__ == "__main__":
    key = jax.random.PRNGKey(0)
    key, kx = jax.random.split(key)

    B = 8
    x = jax.random.normal(kx, (B, 1, 28, 28), jnp.float32)  # MNIST-like NCHW input
    params = init_params(key)

    out = mymodel_forward(x, params)
    out = jax.block_until_ready(out)

    ref = reference_forward(x, params)
    assert out.shape == (B, 10), out.shape
    assert jnp.allclose(out, ref, atol=2e-3, rtol=2e-3), "mismatch vs reference"

    print("KERNEL_OK")
</pallas_src>

<mosaic_0001>
module attributes {stable_mosaic.version = 11 : i64} {
  func.func @mlp_kernel(%arg0: i32, %arg1: memref<8x896xf32, #tpu.memory_space<vmem>>, %arg2: memref<896x512xbf16, #tpu.memory_space<vmem>>, %arg3: memref<512x256xbf16, #tpu.memory_space<vmem>>, %arg4: memref<256x128xbf16, #tpu.memory_space<vmem>>, %arg5: memref<128x128xbf16, #tpu.memory_space<vmem>>, %arg6: memref<128x128xbf16, #tpu.memory_space<vmem>>, %arg7: memref<1x1152xf32, #tpu.memory_space<vmem>>, %arg8: memref<8x128xf32, #tpu.memory_space<vmem>>) attributes {dimension_semantics = [#tpu.dimension_semantics<parallel>], iteration_bounds = array<i64: 1>, scalar_prefetch = 0 : i64, scratch_operands = 0 : i64, tpu.core_type = #tpu.core_type<tc>, window_params = [{transform_indices = @transform_0, window_bounds = array<i64: 8, 896>}, {pipeline_mode = #tpu.pipeline_mode<synchronous>, transform_indices = @transform_1, window_bounds = array<i64: 896, 512>}, {pipeline_mode = #tpu.pipeline_mode<synchronous>, transform_indices = @transform_2, window_bounds = array<i64: 512, 256>}, {pipeline_mode = #tpu.pipeline_mode<synchronous>, transform_indices = @transform_3, window_bounds = array<i64: 256, 128>}, {pipeline_mode = #tpu.pipeline_mode<synchronous>, transform_indices = @transform_4, window_bounds = array<i64: 128, 128>}, {pipeline_mode = #tpu.pipeline_mode<synchronous>, transform_indices = @transform_5, window_bounds = array<i64: 128, 128>}, {pipeline_mode = #tpu.pipeline_mode<synchronous>, transform_indices = @transform_6, window_bounds = array<i64: 1, 1152>}, {transform_indices = @transform_7, window_bounds = array<i64: 8, 128>}]} {
    %c0 = arith.constant 0 : index
    %c0_0 = arith.constant 0 : index
    %0 = vector.load %arg1[%c0, %c0_0] : memref<8x896xf32, #tpu.memory_space<vmem>>, vector<8x896xf32>
    %c0_1 = arith.constant 0 : index
    %c0_2 = arith.constant 0 : index
    %1 = vector.load %arg7[%c0_1, %c0_2] : memref<1x1152xf32, #tpu.memory_space<vmem>>, vector<1x512xf32>
    %2 = arith.truncf %0 : vector<8x896xf32> to vector<8x896xbf16>
    %c0_3 = arith.constant 0 : index
    %c0_4 = arith.constant 0 : index
    %3 = vector.load %arg2[%c0_3, %c0_4] : memref<896x512xbf16, #tpu.memory_space<vmem>>, vector<896x512xbf16>
    %cst = arith.constant dense<0.000000e+00> : vector<8x512xf32>
    %4 = tpu.matmul %2, %3, %cst {dimension_numbers = #tpu.dot_dimension_numbers<[1], [0], [0], [1], [0, 0, 1, 1], [], []>} : vector<8x896xbf16>, vector<896x512xbf16>, vector<8x512xf32> -> vector<8x512xf32>
    %5 = vector.broadcast %1 : vector<1x512xf32> to vector<8x512xf32>
    %6 = arith.addf %4, %5 : vector<8x512xf32>
    %cst_5 = arith.constant 0.000000e+00 : f32
    %7 = vector.broadcast %cst_5 : f32 to vector<8x512xf32>
    %8 = arith.maximumf %6, %7 : vector<8x512xf32>
    %c0_6 = arith.constant 0 : index
    %c512 = arith.constant 512 : index
    %9 = vector.load %arg7[%c0_6, %c512] : memref<1x1152xf32, #tpu.memory_space<vmem>>, vector<1x256xf32>
    %10 = arith.truncf %8 : vector<8x512xf32> to vector<8x512xbf16>
    %c0_7 = arith.constant 0 : index
    %c0_8 = arith.constant 0 : index
    %11 = vector.load %arg3[%c0_7, %c0_8] : memref<512x256xbf16, #tpu.memory_space<vmem>>, vector<512x256xbf16>
    %cst_9 = arith.constant dense<0.000000e+00> : vector<8x256xf32>
    %12 = tpu.matmul %10, %11, %cst_9 {dimension_numbers = #tpu.dot_dimension_numbers<[1], [0], [0], [1], [0, 0, 1, 1], [], []>} : vector<8x512xbf16>, vector<512x256xbf16>, vector<8x256xf32> -> vector<8x256xf32>
    %13 = vector.broadcast %9 : vector<1x256xf32> to vector<8x256xf32>
    %14 = arith.addf %12, %13 : vector<8x256xf32>
    %cst_10 = arith.constant 0.000000e+00 : f32
    %15 = vector.broadcast %cst_10 : f32 to vector<8x256xf32>
    %16 = arith.maximumf %14, %15 : vector<8x256xf32>
    %c0_11 = arith.constant 0 : index
    %c768 = arith.constant 768 : index
    %17 = vector.load %arg7[%c0_11, %c768] : memref<1x1152xf32, #tpu.memory_space<vmem>>, vector<1x128xf32>
    %18 = arith.truncf %16 : vector<8x256xf32> to vector<8x256xbf16>
    %c0_12 = arith.constant 0 : index
    %c0_13 = arith.constant 0 : index
    %19 = vector.load %arg4[%c0_12, %c0_13] : memref<256x128xbf16, #tpu.memory_space<vmem>>, vector<256x128xbf16>
    %cst_14 = arith.constant dense<0.000000e+00> : vector<8x128xf32>
    %20 = tpu.matmul %18, %19, %cst_14 {dimension_numbers = #tpu.dot_dimension_numbers<[1], [0], [0], [1], [0, 0, 1, 1], [], []>} : vector<8x256xbf16>, vector<256x128xbf16>, vector<8x128xf32> -> vector<8x128xf32>
    %21 = vector.broadcast %17 : vector<1x128xf32> to vector<8x128xf32>
    %22 = arith.addf %20, %21 : vector<8x128xf32>
    %cst_15 = arith.constant 0.000000e+00 : f32
    %23 = vector.broadcast %cst_15 : f32 to vector<8x128xf32>
    %24 = arith.maximumf %22, %23 : vector<8x128xf32>
    %c0_16 = arith.constant 0 : index
    %c896 = arith.constant 896 : index
    %25 = vector.load %arg7[%c0_16, %c896] : memref<1x1152xf32, #tpu.memory_space<vmem>>, vector<1x128xf32>
    %26 = arith.truncf %24 : vector<8x128xf32> to vector<8x128xbf16>
    %c0_17 = arith.constant 0 : index
    %c0_18 = arith.constant 0 : index
    %27 = vector.load %arg5[%c0_17, %c0_18] : memref<128x128xbf16, #tpu.memory_space<vmem>>, vector<128x128xbf16>
    %cst_19 = arith.constant dense<0.000000e+00> : vector<8x128xf32>
    %28 = tpu.matmul %26, %27, %cst_19 {dimension_numbers = #tpu.dot_dimension_numbers<[1], [0], [0], [1], [0, 0, 1, 1], [], []>} : vector<8x128xbf16>, vector<128x128xbf16>, vector<8x128xf32> -> vector<8x128xf32>
    %29 = vector.broadcast %25 : vector<1x128xf32> to vector<8x128xf32>
    %30 = arith.addf %28, %29 : vector<8x128xf32>
    %cst_20 = arith.constant 0.000000e+00 : f32
    %31 = vector.broadcast %cst_20 : f32 to vector<8x128xf32>
    %32 = arith.maximumf %30, %31 : vector<8x128xf32>
    %c0_21 = arith.constant 0 : index
    %c1024 = arith.constant 1024 : index
    %33 = vector.load %arg7[%c0_21, %c1024] : memref<1x1152xf32, #tpu.memory_space<vmem>>, vector<1x128xf32>
    %34 = arith.truncf %32 : vector<8x128xf32> to vector<8x128xbf16>
    %c0_22 = arith.constant 0 : index
    %c0_23 = arith.constant 0 : index
    %35 = vector.load %arg6[%c0_22, %c0_23] : memref<128x128xbf16, #tpu.memory_space<vmem>>, vector<128x128xbf16>
    %cst_24 = arith.constant dense<0.000000e+00> : vector<8x128xf32>
    %36 = tpu.matmul %34, %35, %cst_24 {dimension_numbers = #tpu.dot_dimension_numbers<[1], [0], [0], [1], [0, 0, 1, 1], [], []>} : vector<8x128xbf16>, vector<128x128xbf16>, vector<8x128xf32> -> vector<8x128xf32>
    %37 = vector.broadcast %33 : vector<1x128xf32> to vector<8x128xf32>
    %38 = arith.addf %36, %37 : vector<8x128xf32>
    %c0_25 = arith.constant 0 : index
    %c0_26 = arith.constant 0 : index
    %39 = vector.load %arg8[%c0_25, %c0_26] : memref<8x128xf32, #tpu.memory_space<vmem>>, vector<8x128xf32>
    tpu.vector_store %arg8[%c0_25, %c0_26], %38 {strides = array<i32>} : memref<8x128xf32, #tpu.memory_space<vmem>>, vector<8x128xf32>,
    return
  }
  func.func @transform_0(%arg0: i32) -> (i32, i32) {
    %c0_i32 = arith.constant 0 : i32
    %c0_i32_0 = arith.constant 0 : i32
    return %arg0, %c0_i32 : i32, i32
  }
  func.func @transform_1(%arg0: i32) -> (i32, i32) {
    %c0_i32 = arith.constant 0 : i32
    %c0_i32_0 = arith.constant 0 : i32
    %c0_i32_1 = arith.constant 0 : i32
    return %c0_i32, %c0_i32_0 : i32, i32
  }
  func.func @transform_2(%arg0: i32) -> (i32, i32) {
    %c0_i32 = arith.constant 0 : i32
    %c0_i32_0 = arith.constant 0 : i32
    %c0_i32_1 = arith.constant 0 : i32
    return %c0_i32, %c0_i32_0 : i32, i32
  }
  func.func @transform_3(%arg0: i32) -> (i32, i32) {
    %c0_i32 = arith.constant 0 : i32
    %c0_i32_0 = arith.constant 0 : i32
    %c0_i32_1 = arith.constant 0 : i32
    return %c0_i32, %c0_i32_0 : i32, i32
  }
  func.func @transform_4(%arg0: i32) -> (i32, i32) {
    %c0_i32 = arith.constant 0 : i32
    %c0_i32_0 = arith.constant 0 : i32
    %c0_i32_1 = arith.constant 0 : i32
    return %c0_i32, %c0_i32_0 : i32, i32
  }
  func.func @transform_5(%arg0: i32) -> (i32, i32) {
    %c0_i32 = arith.constant 0 : i32
    %c0_i32_0 = arith.constant 0 : i32
    %c0_i32_1 = arith.constant 0 : i32
    return %c0_i32, %c0_i32_0 : i32, i32
  }
  func.func @transform_6(%arg0: i32) -> (i32, i32) {
    %c0_i32 = arith.constant 0 : i32
    %c0_i32_0 = arith.constant 0 : i32
    %c0_i32_1 = arith.constant 0 : i32
    return %c0_i32, %c0_i32_0 : i32, i32
  }
  func.func @transform_7(%arg0: i32) -> (i32, i32) {
    %c0_i32 = arith.constant 0 : i32
    %c0_i32_0 = arith.constant 0 : i32
    return %arg0, %c0_i32 : i32, i32
  }
}

</mosaic_0001>

<llo_original>
// kernel: tpu_custom_call.1
$region0: #{tpu_custom_call.1}
  #allocation0 [shape = 'u32[]', space=smem, size = 0x4, offset = 0x4, fixed_abs, tag = 'smem constant byte address 0x4 - core index']
  #allocation1 [shape = 'u32[144,128]{1,0:T(1,128)}', space=vmem, size = 0x12000, scoped, tag = 'internal scratch']
  %s0 = inlined_call_operand.hbm [shape: f32[8,896], index: 0, kind: input, shape index: {}]
  %s1 = inlined_call_operand.hbm [shape: bf16[896,512], index: 1, kind: input, shape index: {}]
  %s2 = inlined_call_operand.hbm [shape: bf16[512,256], index: 2, kind: input, shape index: {}]
  %s3 = inlined_call_operand.hbm [shape: bf16[256,128], index: 3, kind: input, shape index: {}]
  %s4 = inlined_call_operand.hbm [shape: bf16[128,128], index: 4, kind: input, shape index: {}]
  %s5 = inlined_call_operand.hbm [shape: bf16[128,128], index: 5, kind: input, shape index: {}]
  %s6 = inlined_call_operand.vmem [shape: f32[1,1152], index: 6, kind: input, shape index: {}]
  %s7 = inlined_call_operand.hbm [shape: f32[8,128], index: 7, kind: output, shape index: {}]
  %s8 = sld [smem:[#allocation0]]
  $region62: #{tpu_custom_call.1} parent=0
    _
  %s10 = ssub.s32 1, %s8
  %s11 = scalar_select 0, %s10, %s8
  $region1: #{tpu_custom_call.1} parent=0
    #allocation2 [shape = 'u8[28672]{0}', space=vmem, size = 0x7000, scoped, tag = 'input window, operand 0, single buffered']
    #allocation3 [shape = 's32[1]{0}', space=sflag, size = 0x4, scoped, tag = 'scoped memory for tpu_custom_call.1']
    #allocation4 [shape = 's32[1]{0}', space=sflag, size = 0x4, scoped, tag = 'scoped memory for tpu_custom_call.1']
    #allocation5 [shape = 'u8[917504]{0}', space=vmem, size = 0xe0000, scoped, tag = 'input window, operand 1, single buffered']
    #allocation6 [shape = 's32[1]{0}', space=sflag, size = 0x4, scoped, tag = 'scoped memory for tpu_custom_call.1']
    #allocation7 [shape = 'u8[262144]{0}', space=vmem, size = 0x40000, scoped, tag = 'input window, operand 2, single buffered']
    #allocation8 [shape = 'u8[65536]{0}', space=vmem, size = 0x10000, scoped, tag = 'input window, operand 3, single buffered']
    #allocation9 [shape = 's32[1]{0}', space=sflag, size = 0x4, scoped, tag = 'scoped memory for tpu_custom_call.1']
    #allocation10 [shape = 'u8[32768]{0}', space=vmem, size = 0x8000, scoped, tag = 'input window, operand 4, single buffered']
    #allocation11 [shape = 'u8[32768]{0}', space=vmem, size = 0x8000, scoped, tag = 'input window, operand 5, single buffered']
    #allocation12 [shape = 's32[1]{0}', space=sflag, size = 0x4, scoped, tag = 'scoped memory for tpu_custom_call.1']
    #allocation13 [shape = 'u8[4096]{0}', space=vmem, size = 0x1000, scoped, tag = 'output window, operand 0, single buffered']
    %12 = vsyncpa [#allocation3], 0
    %13 = vsyncpa [#allocation6], 0
    %14 = vsyncpa [#allocation9], 0
    %15 = vsyncpa [#allocation12], 0
    %16 = vsyncpa [#allocation4], 0
    // Predicated region
    $region2: #{tpu_custom_call.1} parent=1 // pred_check
      _
    $region3: #{tpu_custom_call.1} parent=1 // pred_check_branch
      %18 = sbr.rel (0) target = $region5
    $region4: #{tpu_custom_call.1} parent=1 // pred_region
      %s20 = ssub.s32 896, 896
      %21 = vsyncadd [#allocation3], %s20
      %s23 = sshll.u32 [#allocation2], 4
      %s24 = int_to_ptr.vmem [resolvable:$true] %s23
      %26 = dma.hbm_to_vmem [thread:$0]  %s0, 896, %s24, [#allocation3]
    $region5: #{tpu_custom_call.1} parent=1 // pred_fallthru
      _
    // Predicated region
    $region6: #{tpu_custom_call.1} parent=1 // pred_check
      _
    $region7: #{tpu_custom_call.1} parent=1 // pred_check_branch
      %28 = sbr.rel (0) target = $region9
    $region8: #{tpu_custom_call.1} parent=1 // pred_region
      %s30 = ssub.s32 28672, 28672
      %31 = vsyncadd [#allocation6], %s30
      %s32 = sshll.u32 [#allocation5], 4
      %s33 = int_to_ptr.vmem [resolvable:$true] %s32
      %38 = dma.hbm_to_vmem [thread:$0]  %s1, 28672, %s33, [#allocation6], 256, 256, 16
    $region9: #{tpu_custom_call.1} parent=1 // pred_fallthru
      _
    // Predicated region
    $region10: #{tpu_custom_call.1} parent=1 // pred_check
      _
    $region11: #{tpu_custom_call.1} parent=1 // pred_check_branch
      %40 = sbr.rel (0) target = $region13
    $region12: #{tpu_custom_call.1} parent=1 // pred_region
      %s42 = ssub.s32 8192, 8192
      %43 = vsyncadd [#allocation6], %s42
      %s44 = sshll.u32 [#allocation7], 4
      %s45 = int_to_ptr.vmem [resolvable:$true] %s44
      %50 = dma.hbm_to_vmem [thread:$0]  %s2, 8192, %s45, [#allocation6], 128, 128, 8
    $region13: #{tpu_custom_call.1} parent=1 // pred_fallthru
      _
    // Predicated region
    $region14: #{tpu_custom_call.1} parent=1 // pred_check
      _
    $region15: #{tpu_custom_call.1} parent=1 // pred_check_branch
      %52 = sbr.rel (0) target = $region17
    $region16: #{tpu_custom_call.1} parent=1 // pred_region
      %s54 = ssub.s32 2048, 2048
      %55 = vsyncadd [#allocation9], %s54
      %s56 = sshll.u32 [#allocation8], 4
      %s57 = int_to_ptr.vmem [resolvable:$true] %s56
      %62 = dma.hbm_to_vmem [thread:$0]  %s3, 2048, %s57, [#allocation9], 64, 64, 4
    $region17: #{tpu_custom_call.1} parent=1 // pred_fallthru
      _
    // Predicated region
    $region18: #{tpu_custom_call.1} parent=1 // pred_check
      _
    $region19: #{tpu_custom_call.1} parent=1 // pred_check_branch
      %64 = sbr.rel (0) target = $region21
    $region20: #{tpu_custom_call.1} parent=1 // pred_region
      %s66 = ssub.s32 1024, 1024
      %67 = vsyncadd [#allocation9], %s66
      %s68 = sshll.u32 [#allocation10], 4
      %s69 = int_to_ptr.vmem [resolvable:$true] %s68
      %74 = dma.hbm_to_vmem [thread:$0]  %s4, 1024, %s69, [#allocation9], 64, 64, 4
    $region21: #{tpu_custom_call.1} parent=1 // pred_fallthru
      _
    // Predicated region
    $region22: #{tpu_custom_call.1} parent=1 // pred_check
      _
    $region23: #{tpu_custom_call.1} parent=1 // pred_check_branch
      %76 = sbr.rel (0) target = $region25
    $region24: #{tpu_custom_call.1} parent=1 // pred_region
      %s78 = ssub.s32 1024, 1024
      %79 = vsyncadd [#allocation12], %s78
      %s80 = sshll.u32 [#allocation11], 4
      %s81 = int_to_ptr.vmem [resolvable:$true] %s80
      %86 = dma.hbm_to_vmem [thread:$0]  %s5, 1024, %s81, [#allocation12], 64, 64, 4
    $region25: #{tpu_custom_call.1} parent=1 // pred_fallthru
      _
    // Predicated region
    $region26: #{tpu_custom_call.1} parent=1 // pred_check
      _
    $region27: #{tpu_custom_call.1} parent=1 // pred_check_branch
      %88 = sbr.rel (0) target = $region29
    $region28: #{tpu_custom_call.1} parent=1 // pred_region
      _
    $region29: #{tpu_custom_call.1} parent=1 // pred_fallthru
      _
    // Predicated region
    $region30: #{tpu_custom_call.1} parent=1 // pred_check
      _
    $region31: #{tpu_custom_call.1} parent=1 // pred_check_branch
      %90 = sbr.rel (0) target = $region33
    $region32: #{tpu_custom_call.1} parent=1 // pred_region
      %91 = dma.done [#allocation3], 896
    $region33: #{tpu_custom_call.1} parent=1 // pred_fallthru
      _
    // Predicated region
    $region34: #{tpu_custom_call.1} parent=1 // pred_check
      _
    $region35: #{tpu_custom_call.1} parent=1 // pred_check_branch
      %93 = sbr.rel (0) target = $region37
    $region36: #{tpu_custom_call.1} parent=1 // pred_region
      %94 = dma.done [#allocation6], 28672
    $region37: #{tpu_custom_call.1} parent=1 // pred_fallthru
      _
    // Predicated region
    $region38: #{tpu_custom_call.1} parent=1 // pred_check
      _
    $region39: #{tpu_custom_call.1} parent=1 // pred_check_branch
      %96 = sbr.rel (0) target = $region41
    $region40: #{tpu_custom_call.1} parent=1 // pred_region
      %97 = dma.done [#allocation6], 8192
    $region41: #{tpu_custom_call.1} parent=1 // pred_fallthru
      _
    // Predicated region
    $region42: #{tpu_custom_call.1} parent=1 // pred_check
      _
    $region43: #{tpu_custom_call.1} parent=1 // pred_check_branch
      %99 = sbr.rel (0) target = $region45
    $region44: #{tpu_custom_call.1} parent=1 // pred_region
      %100 = dma.done [#allocation9], 2048
    $region45: #{tpu_custom_call.1} parent=1 // pred_fallthru
      _
    // Predicated region
    $region46: #{tpu_custom_call.1} parent=1 // pred_check
      _
    $region47: #{tpu_custom_call.1} parent=1 // pred_check_branch
      %102 = sbr.rel (0) target = $region49
    $region48: #{tpu_custom_call.1} parent=1 // pred_region
      %103 = dma.done [#allocation9], 1024
    $region49: #{tpu_custom_call.1} parent=1 // pred_fallthru
      _
    // Predicated region
    $region50: #{tpu_custom_call.1} parent=1 // pred_check
      _
    $region51: #{tpu_custom_call.1} parent=1 // pred_check_branch
      %105 = sbr.rel (0) target = $region53
    $region52: #{tpu_custom_call.1} parent=1 // pred_region
      %106 = dma.done [#allocation12], 1024
    $region53: #{tpu_custom_call.1} parent=1 // pred_fallthru
      _
    %v108 = vld [vmem:[#allocation2] sm:$0xff]
    %v109 = vld [vmem:[#allocation2 + $0x8] sm:$0xff]
    %v110 = vld [vmem:[#allocation2 + $0x10] sm:$0xff]
    %v111 = vld [vmem:[#allocation2 + $0x18] sm:$0xff]
    %v112 = vld [vmem:[#allocation2 + $0x20] sm:$0xff]
    %v113 = vld [vmem:[#allocation2 + $0x28] sm:$0xff]
    %v114 = vld [vmem:[#allocation2 + $0x30] sm:$0xff]
    %v115 = vld [vmem:[%s6] sm:$0xf]
    %v116 = vpack.c.bf16 %v108, %v108
    %v117 = vpack.c.bf16 %v109, %v109
    %v118 = vpack.c.bf16 %v110, %v110
    %v119 = vpack.c.bf16 %v111, %v111
    %v120 = vpack.c.bf16 %v112, %v112
    %v121 = vpack.c.bf16 %v113, %v113
    %v122 = vpack.c.bf16 %v114, %v114
    %v123 = vld [vmem:[#allocation5] sm:$0xff]
    %v124 = vld [vmem:[#allocation5 + $0x8] sm:$0xff]
    %v125 = vld [vmem:[#allocation5 + $0x10] sm:$0xff]
    %v126 = vld [vmem:[#allocation5 + $0x18] sm:$0xff]
    %v127 = vld [vmem:[#allocation5 + $0x20] sm:$0xff]
    %v128 = vld [vmem:[#allocation5 + $0x28] sm:$0xff]
    %v129 = vld [vmem:[#allocation5 + $0x30] sm:$0xff]
    %v130 = vld [vmem:[#allocation5 + $0x38] sm:$0xff]
    %v131 = vld [vmem:[#allocation5 + $0x40] sm:$0xff]
    %v132 = vld [vmem:[#allocation5 + $0x48] sm:$0xff]
    %v133 = vld [vmem:[#allocation5 + $0x50] sm:$0xff]
    %v134 = vld [vmem:[#allocation5 + $0x58] sm:$0xff]
    %v135 = vld [vmem:[#allocation5 + $0x60] sm:$0xff]
    %v136 = vld [vmem:[#allocation5 + $0x68] sm:$0xff]
    %v137 = vld [vmem:[#allocation5 + $0x70] sm:$0xff]
    %v138 = vld [vmem:[#allocation5 + $0x78] sm:$0xff]
    %v139 = vld [vmem:[#allocation5 + $0x80] sm:$0xff]
    %v140 = vld [vmem:[#allocation5 + $0x88] sm:$0xff]
    %v141 = vld [vmem:[#allocation5 + $0x90] sm:$0xff]
    %v142 = vld [vmem:[#allocation5 + $0x98] sm:$0xff]
    %v143 = vld [vmem:[#allocation5 + $0xa0] sm:$0xff]
    %v144 = vld [vmem:[#allocation5 + $0xa8] sm:$0xff]
    %v145 = vld [vmem:[#allocation5 + $0xb0] sm:$0xff]
    %v146 = vld [vmem:[#allocation5 + $0xb8] sm:$0xff]
    %v147 = vld [vmem:[#allocation5 + $0xc0] sm:$0xff]
    %v148 = vld [vmem:[#allocation5 + $0xc8] sm:$0xff]
    %v149 = vld [vmem:[#allocation5 + $0xd0] sm:$0xff]
    %v150 = vld [vmem:[#allocation5 + $0xd8] sm:$0xff]
    %v151 = vld [vmem:[#allocation5 + $0xe0] sm:$0xff]
    %v152 = vld [vmem:[#allocation5 + $0xe8] sm:$0xff]
    %v153 = vld [vmem:[#allocation5 + $0xf0] sm:$0xff]
    %v154 = vld [vmem:[#allocation5 + $0xf8] sm:$0xff]
    %v155 = vld [vmem:[#allocation5 + $0x100] sm:$0xff]
    %v156 = vld [vmem:[#allocation5 + $0x108] sm:$0xff]
    %v157 = vld [vmem:[#allocation5 + $0x110] sm:$0xff]
    %v158 = vld [vmem:[#allocation5 + $0x118] sm:$0xff]
    %v159 = vld [vmem:[#allocation5 + $0x120] sm:$0xff]
    %v160 = vld [vmem:[#allocation5 + $0x128] sm:$0xff]
    %v161 = vld [vmem:[#allocation5 + $0x130] sm:$0xff]
    %v162 = vld [vmem:[#allocation5 + $0x138] sm:$0xff]
    %v163 = vld [vmem:[#allocation5 + $0x140] sm:$0xff]
    %v164 = vld [vmem:[#allocation5 + $0x148] sm:$0xff]
    %v165 = vld [vmem:[#allocation5 + $0x150] sm:$0xff]
    %v166 = vld [vmem:[#allocation5 + $0x158] sm:$0xff]
    %v167 = vld [vmem:[#allocation5 + $0x160] sm:$0xff]
    %v168 = vld [vmem:[#allocation5 + $0x168] sm:$0xff]
    %v169 = vld [vmem:[#allocation5 + $0x170] sm:$0xff]
    %v170 = vld [vmem:[#allocation5 + $0x178] sm:$0xff]
    %v171 = vld [vmem:[#allocation5 + $0x180] sm:$0xff]
    %v172 = vld [vmem:[#allocation5 + $0x188] sm:$0xff]
    %v173 = vld [vmem:[#allocation5 + $0x190] sm:$0xff]
    %v174 = vld [vmem:[#allocation5 + $0x198] sm:$0xff]
    %v175 = vld [vmem:[#allocation5 + $0x1a0] sm:$0xff]
    %v176 = vld [vmem:[#allocation5 + $0x1a8] sm:$0xff]
    %v177 = vld [vmem:[#allocation5 + $0x1b0] sm:$0xff]
    %v178 = vld [vmem:[#allocation5 + $0x1b8] sm:$0xff]
    %v179 = vld [vmem:[#allocation5 + $0x1c0] sm:$0xff]
    %v180 = vld [vmem:[#allocation5 + $0x1c8] sm:$0xff]
    %v181 = vld [vmem:[#allocation5 + $0x1d0] sm:$0xff]
    %v182 = vld [vmem:[#allocation5 + $0x1d8] sm:$0xff]
    %v183 = vld [vmem:[#allocation5 + $0x1e0] sm:$0xff]
    %v184 = vld [vmem:[#allocation5 + $0x1e8] sm:$0xff]
    %v185 = vld [vmem:[#allocation5 + $0x1f0] sm:$0xff]
    %v186 = vld [vmem:[#allocation5 + $0x1f8] sm:$0xff]
    %v187 = vld [vmem:[#allocation5 + $0x200] sm:$0xff]
    %v188 = vld [vmem:[#allocation5 + $0x208] sm:$0xff]
    %v189 = vld [vmem:[#allocation5 + $0x210] sm:$0xff]
    %v190 = vld [vmem:[#allocation5 + $0x218] sm:$0xff]
    %v191 = vld [vmem:[#allocation5 + $0x220] sm:$0xff]
    %v192 = vld [vmem:[#allocation5 + $0x228] sm:$0xff]
    %v193 = vld [vmem:[#allocation5 + $0x230] sm:$0xff]
    %v194 = vld [vmem:[#allocation5 + $0x238] sm:$0xff]
    %v195 = vld [vmem:[#allocation5 + $0x240] sm:$0xff]
    %v196 = vld [vmem:[#allocation5 + $0x248] sm:$0xff]
    %v197 = vld [vmem:[#allocation5 + $0x250] sm:$0xff]
    %v198 = vld [vmem:[#allocation5 + $0x258] sm:$0xff]
    %v199 = vld [vmem:[#allocation5 + $0x260] sm:$0xff]
    %v200 = vld [vmem:[#allocation5 + $0x268] sm:$0xff]
    %v201 = vld [vmem:[#allocation5 + $0x270] sm:$0xff]
    %v202 = vld [vmem:[#allocation5 + $0x278] sm:$0xff]
    %v203 = vld [vmem:[#allocation5 + $0x280] sm:$0xff]
    %v204 = vld [vmem:[#allocation5 + $0x288] sm:$0xff]
    %v205 = vld [vmem:[#allocation5 + $0x290] sm:$0xff]
    %v206 = vld [vmem:[#allocation5 + $0x298] sm:$0xff]
    %v207 = vld [vmem:[#allocation5 + $0x2a0] sm:$0xff]
    %v208 = vld [vmem:[#allocation5 + $0x2a8] sm:$0xff]
    %v209 = vld [vmem:[#allocation5 + $0x2b0] sm:$0xff]
    %v210 = vld [vmem:[#allocation5 + $0x2b8] sm:$0xff]
    %v211 = vld [vmem:[#allocation5 + $0x2c0] sm:$0xff]
    %v212 = vld [vmem:[#allocation5 + $0x2c8] sm:$0xff]
    %v213 = vld [vmem:[#allocation5 + $0x2d0] sm:$0xff]
    %v214 = vld [vmem:[#allocation5 + $0x2d8] sm:$0xff]
    %v215 = vld [vmem:[#allocation5 + $0x2e0] sm:$0xff]
    %v216 = vld [vmem:[#allocation5 + $0x2e8] sm:$0xff]
    %v217 = vld [vmem:[#allocation5 + $0x2f0] sm:$0xff]
    %v218 = vld [vmem:[#allocation5 + $0x2f8] sm:$0xff]
    %v219 = vld [vmem:[#allocation5 + $0x300] sm:$0xff]
    %v220 = vld [vmem:[#allocation5 + $0x308] sm:$0xff]
    %v221 = vld [vmem:[#allocation5 + $0x310] sm:$0xff]
    %v222 = vld [vmem:[#allocation5 + $0x318] sm:$0xff]
    %v223 = vld [vmem:[#allocation5 + $0x320] sm:$0xff]
    %v224 = vld [vmem:[#allocation5 + $0x328] sm:$0xff]
    %v225 = vld [vmem:[#allocation5 + $0x330] sm:$0xff]
    %v226 = vld [vmem:[#allocation5 + $0x338] sm:$0xff]
    %v227 = vld [vmem:[#allocation5 + $0x340] sm:$0xff]
    %v228 = vld [vmem:[#allocation5 + $0x348] sm:$0xff]
    %v229 = vld [vmem:[#allocation5 + $0x350] sm:$0xff]
    %v230 = vld [vmem:[#allocation5 + $0x358] sm:$0xff]
    %v231 = vld [vmem:[#allocation5 + $0x360] sm:$0xff]
    %v232 = vld [vmem:[#allocation5 + $0x368] sm:$0xff]
    %v233 = vld [vmem:[#allocation5 + $0x370] sm:$0xff]
    %v234 = vld [vmem:[#allocation5 + $0x378] sm:$0xff]
    %v235 = vld [vmem:[#allocation5 + $0x380] sm:$0xff]
    %v236 = vld [vmem:[#allocation5 + $0x388] sm:$0xff]
    %v237 = vld [vmem:[#allocation5 + $0x390] sm:$0xff]
    %v238 = vld [vmem:[#allocation5 + $0x398] sm:$0xff]
    %v239 = vld [vmem:[#allocation5 + $0x3a0] sm:$0xff]
    %v240 = vld [vmem:[#allocation5 + $0x3a8] sm:$0xff]
    %v241 = vld [vmem:[#allocation5 + $0x3b0] sm:$0xff]
    %v242 = vld [vmem:[#allocation5 + $0x3b8] sm:$0xff]
    %v243 = vld [vmem:[#allocation5 + $0x3c0] sm:$0xff]
    %v244 = vld [vmem:[#allocation5 + $0x3c8] sm:$0xff]
    %v245 = vld [vmem:[#allocation5 + $0x3d0] sm:$0xff]
    %v246 = vld [vmem:[#allocation5 + $0x3d8] sm:$0xff]
    %v247 = vld [vmem:[#allocation5 + $0x3e0] sm:$0xff]
    %v248 = vld [vmem:[#allocation5 + $0x3e8] sm:$0xff]
    %v249 = vld [vmem:[#allocation5 + $0x3f0] sm:$0xff]
    %v250 = vld [vmem:[#allocation5 + $0x3f8] sm:$0xff]
    %v251 = vld [vmem:[#allocation5 + $0x400] sm:$0xff]
    %v252 = vld [vmem:[#allocation5 + $0x408] sm:$0xff]
    %v253 = vld [vmem:[#allocation5 + $0x410] sm:$0xff]
    %v254 = vld [vmem:[#allocation5 + $0x418] sm:$0xff]
    %v255 = vld [vmem:[#allocation5 + $0x420] sm:$0xff]
    %v256 = vld [vmem:[#allocation5 + $0x428] sm:$0xff]
    %v257 = vld [vmem:[#allocation5 + $0x430] sm:$0xff]
    %v258 = vld [vmem:[#allocation5 + $0x438] sm:$0xff]
    %v259 = vld [vmem:[#allocation5 + $0x440] sm:$0xff]
    %v260 = vld [vmem:[#allocation5 + $0x448] sm:$0xff]
    %v261 = vld [vmem:[#allocation5 + $0x450] sm:$0xff]
    %v262 = vld [vmem:[#allocation5 + $0x458] sm:$0xff]
    %v263 = vld [vmem:[#allocation5 + $0x460] sm:$0xff]
    %v264 = vld [vmem:[#allocation5 + $0x468] sm:$0xff]
    %v265 = vld [vmem:[#allocation5 + $0x470] sm:$0xff]
    %v266 = vld [vmem:[#allocation5 + $0x478] sm:$0xff]
    %v267 = vld [vmem:[#allocation5 + $0x480] sm:$0xff]
    %v268 = vld [vmem:[#allocation5 + $0x488] sm:$0xff]
    %v269 = vld [vmem:[#allocation5 + $0x490] sm:$0xff]
    %v270 = vld [vmem:[#allocation5 + $0x498] sm:$0xff]
    %v271 = vld [vmem:[#allocation5 + $0x4a0] sm:$0xff]
    %v272 = vld [vmem:[#allocation5 + $0x4a8] sm:$0xff]
    %v273 = vld [vmem:[#allocation5 + $0x4b0] sm:$0xff]
    %v274 = vld [vmem:[#allocation5 + $0x4b8] sm:$0xff]
    %v275 = vld [vmem:[#allocation5 + $0x4c0] sm:$0xff]
    %v276 = vld [vmem:[#allocation5 + $0x4c8] sm:$0xff]
    %v277 = vld [vmem:[#allocation5 + $0x4d0] sm:$0xff]
    %v278 = vld [vmem:[#allocation5 + $0x4d8] sm:$0xff]
    %v279 = vld [vmem:[#allocation5 + $0x4e0] sm:$0xff]
    %v280 = vld [vmem:[#allocation5 + $0x4e8] sm:$0xff]
    %v281 = vld [vmem:[#allocation5 + $0x4f0] sm:$0xff]
    %v282 = vld [vmem:[#allocation5 + $0x4f8] sm:$0xff]
    %v283 = vld [vmem:[#allocation5 + $0x500] sm:$0xff]
    %v284 = vld [vmem:[#allocation5 + $0x508] sm:$0xff]
    %v285 = vld [vmem:[#allocation5 + $0x510] sm:$0xff]
    %v286 = vld [vmem:[#allocation5 + $0x518] sm:$0xff]
    %v287 = vld [vmem:[#allocation5 + $0x520] sm:$0xff]
    %v288 = vld [vmem:[#allocation5 + $0x528] sm:$0xff]
    %v289 = vld [vmem:[#allocation5 + $0x530] sm:$0xff]
    %v290 = vld [vmem:[#allocation5 + $0x538] sm:$0xff]
    %v291 = vld [vmem:[#allocation5 + $0x540] sm:$0xff]
    %v292 = vld [vmem:[#allocation5 + $0x548] sm:$0xff]
    %v293 = vld [vmem:[#allocation5 + $0x550] sm:$0xff]
    %v294 = vld [vmem:[#allocation5 + $0x558] sm:$0xff]
    %v295 = vld [vmem:[#allocation5 + $0x560] sm:$0xff]
    %v296 = vld [vmem:[#allocation5 + $0x568] sm:$0xff]
    %v297 = vld [vmem:[#allocation5 + $0x570] sm:$0xff]
    %v298 = vld [vmem:[#allocation5 + $0x578] sm:$0xff]
    %v299 = vld [vmem:[#allocation5 + $0x580] sm:$0xff]
    %v300 = vld [vmem:[#allocation5 + $0x588] sm:$0xff]
    %v301 = vld [vmem:[#allocation5 + $0x590] sm:$0xff]
    %v302 = vld [vmem:[#allocation5 + $0x598] sm:$0xff]
    %v303 = vld [vmem:[#allocation5 + $0x5a0] sm:$0xff]
    %v304 = vld [vmem:[#allocation5 + $0x5a8] sm:$0xff]
    %v305 = vld [vmem:[#allocation5 + $0x5b0] sm:$0xff]
    %v306 = vld [vmem:[#allocation5 + $0x5b8] sm:$0xff]
    %v307 = vld [vmem:[#allocation5 + $0x5c0] sm:$0xff]
    %v308 = vld [vmem:[#allocation5 + $0x5c8] sm:$0xff]
    %v309 = vld [vmem:[#allocation5 + $0x5d0] sm:$0xff]
    %v310 = vld [vmem:[#allocation5 + $0x5d8] sm:$0xff]
    %v311 = vld [vmem:[#allocation5 + $0x5e0] sm:$0xff]
    %v312 = vld [vmem:[#allocation5 + $0x5e8] sm:$0xff]
    %v313 = vld [vmem:[#allocation5 + $0x5f0] sm:$0xff]
    %v314 = vld [vmem:[#allocation5 + $0x5f8] sm:$0xff]
    %v315 = vld [vmem:[#allocation5 + $0x600] sm:$0xff]
    %v316 = vld [vmem:[#allocation5 + $0x608] sm:$0xff]
    %v317 = vld [vmem:[#allocation5 + $0x610] sm:$0xff]
    %v318 = vld [vmem:[#allocation5 + $0x618] sm:$0xff]
    %v319 = vld [vmem:[#allocation5 + $0x620] sm:$0xff]
    %v320 = vld [vmem:[#allocation5 + $0x628] sm:$0xff]
    %v321 = vld [vmem:[#allocation5 + $0x630] sm:$0xff]
    %v322 = vld [vmem:[#allocation5 + $0x638] sm:$0xff]
    %v323 = vld [vmem:[#allocation5 + $0x640] sm:$0xff]
    %v324 = vld [vmem:[#allocation5 + $0x648] sm:$0xff]
    %v325 = vld [vmem:[#allocation5 + $0x650] sm:$0xff]
    %v326 = vld [vmem:[#allocation5 + $0x658] sm:$0xff]
    %v327 = vld [vmem:[#allocation5 + $0x660] sm:$0xff]
    %v328 = vld [vmem:[#allocation5 + $0x668] sm:$0xff]
    %v329 = vld [vmem:[#allocation5 + $0x670] sm:$0xff]
    %v330 = vld [vmem:[#allocation5 + $0x678] sm:$0xff]
    %v331 = vld [vmem:[#allocation5 + $0x680] sm:$0xff]
    %v332 = vld [vmem:[#allocation5 + $0x688] sm:$0xff]
    %v333 = vld [vmem:[#allocation5 + $0x690] sm:$0xff]
    %v334 = vld [vmem:[#allocation5 + $0x698] sm:$0xff]
    %v335 = vld [vmem:[#allocation5 + $0x6a0] sm:$0xff]
    %v336 = vld [vmem:[#allocation5 + $0x6a8] sm:$0xff]
    %v337 = vld [vmem:[#allocation5 + $0x6b0] sm:$0xff]
    %v338 = vld [vmem:[#allocation5 + $0x6b8] sm:$0xff]
    %v339 = vld [vmem:[#allocation5 + $0x6c0] sm:$0xff]
    %v340 = vld [vmem:[#allocation5 + $0x6c8] sm:$0xff]
    %v341 = vld [vmem:[#allocation5 + $0x6d0] sm:$0xff]
    %v342 = vld [vmem:[#allocation5 + $0x6d8] sm:$0xff]
    %v343 = vld [vmem:[#allocation5 + $0x6e0] sm:$0xff]
    %v344 = vld [vmem:[#allocation5 + $0x6e8] sm:$0xff]
    %v345 = vld [vmem:[#allocation5 + $0x6f0] sm:$0xff]
    %v346 = vld [vmem:[#allocation5 + $0x6f8] sm:$0xff]
    %v348 = vlaneseq
    %v349 = vshrl.u32 %v348, 7
    %v350 = vsub.s32 0, %v349
    %v351 = vrot.slane %v115, %v350
    %v352 = vlaneseq
    %v353 = vshrl.u32 %v352, 7
    %v354 = vsub.s32 1, %v353
    %v355 = vrot.slane %v115, %v354
    %v356 = vlaneseq
    %v357 = vshrl.u32 %v356, 7
    %v358 = vsub.s32 2, %v357
    %v359 = vrot.slane %v115, %v358
    %v360 = vlaneseq
    %v361 = vshrl.u32 %v360, 7
    %v362 = vsub.s32 3, %v361
    %v363 = vrot.slane %v115, %v362
    %v592 = vunpack.c.l.b16 %v123
    %v593 = vunpack.c.h.b16 %v123
    %v594 = vunpack.c.l.b16 %v124
    %v595 = vunpack.c.h.b16 %v124
    %v596 = vunpack.c.l.b16 %v125
    %v597 = vunpack.c.h.b16 %v125
    %v598 = vunpack.c.l.b16 %v126
    %v599 = vunpack.c.h.b16 %v126
    %v600 = vunpack.c.l.b16 %v127
    %v601 = vunpack.c.h.b16 %v127
    %v602 = vunpack.c.l.b16 %v128
    %v603 = vunpack.c.h.b16 %v128
    %v604 = vunpack.c.l.b16 %v129
    %v605 = vunpack.c.h.b16 %v129
    %v606 = vunpack.c.l.b16 %v130
    %v607 = vunpack.c.h.b16 %v130
    %v608 = vunpack.c.l.b16 %v131
    %v609 = vunpack.c.h.b16 %v131
    %v610 = vunpack.c.l.b16 %v132
    %v611 = vunpack.c.h.b16 %v132
    %v612 = vunpack.c.l.b16 %v133
    %v613 = vunpack.c.h.b16 %v133
    %v614 = vunpack.c.l.b16 %v134
    %v615 = vunpack.c.h.b16 %v134
    %v616 = vunpack.c.l.b16 %v135
    %v617 = vunpack.c.h.b16 %v135
    %v618 = vunpack.c.l.b16 %v136
    %v619 = vunpack.c.h.b16 %v136
    %v620 = vunpack.c.l.b16 %v137
    %v621 = vunpack.c.h.b16 %v137
    %v622 = vunpack.c.l.b16 %v138
    %v623 = vunpack.c.h.b16 %v138
    %v624 = vunpack.c.l.b16 %v139
    %v625 = vunpack.c.h.b16 %v139
    %v626 = vunpack.c.l.b16 %v140
    %v627 = vunpack.c.h.b16 %v140
    %v628 = vunpack.c.l.b16 %v141
    %v629 = vunpack.c.h.b16 %v141
    %v630 = vunpack.c.l.b16 %v142
    %v631 = vunpack.c.h.b16 %v142
    %v632 = vunpack.c.l.b16 %v143
    %v633 = vunpack.c.h.b16 %v143
    %v634 = vunpack.c.l.b16 %v144
    %v635 = vunpack.c.h.b16 %v144
    %v636 = vunpack.c.l.b16 %v145
    %v637 = vunpack.c.h.b16 %v145
    %v638 = vunpack.c.l.b16 %v146
    %v639 = vunpack.c.h.b16 %v146
    %v640 = vunpack.c.l.b16 %v147
    %v641 = vunpack.c.h.b16 %v147
    %v642 = vunpack.c.l.b16 %v148
    %v643 = vunpack.c.h.b16 %v148
    %v644 = vunpack.c.l.b16 %v149
    %v645 = vunpack.c.h.b16 %v149
    %v646 = vunpack.c.l.b16 %v150
    %v647 = vunpack.c.h.b16 %v150
    %v648 = vunpack.c.l.b16 %v151
    %v649 = vunpack.c.h.b16 %v151
    %v650 = vunpack.c.l.b16 %v152
    %v651 = vunpack.c.h.b16 %v152
    %v652 = vunpack.c.l.b16 %v153
    %v653 = vunpack.c.h.b16 %v153
    %v654 = vunpack.c.l.b16 %v154
    %v655 = vunpack.c.h.b16 %v154
    %v656 = vunpack.c.l.b16 %v155
    %v657 = vunpack.c.h.b16 %v155
    %v658 = vunpack.c.l.b16 %v156
    %v659 = vunpack.c.h.b16 %v156
    %v660 = vunpack.c.l.b16 %v157
    %v661 = vunpack.c.h.b16 %v157
    %v662 = vunpack.c.l.b16 %v158
    %v663 = vunpack.c.h.b16 %v158
    %v664 = vunpack.c.l.b16 %v159
    %v665 = vunpack.c.h.b16 %v159
    %v666 = vunpack.c.l.b16 %v160
    %v667 = vunpack.c.h.b16 %v160
    %v668 = vunpack.c.l.b16 %v161
    %v669 = vunpack.c.h.b16 %v161
    %v670 = vunpack.c.l.b16 %v162
    %v671 = vunpack.c.h.b16 %v162
    %v672 = vunpack.c.l.b16 %v163
    %v673 = vunpack.c.h.b16 %v163
    %v674 = vunpack.c.l.b16 %v164
    %v675 = vunpack.c.h.b16 %v164
    %v676 = vunpack.c.l.b16 %v165
    %v677 = vunpack.c.h.b16 %v165
    %v678 = vunpack.c.l.b16 %v166
    %v679 = vunpack.c.h.b16 %v166
    %v680 = vunpack.c.l.b16 %v167
    %v681 = vunpack.c.h.b16 %v167
    %v682 = vunpack.c.l.b16 %v168
    %v683 = vunpack.c.h.b16 %v168
    %v684 = vunpack.c.l.b16 %v169
    %v685 = vunpack.c.h.b16 %v169
    %v686 = vunpack.c.l.b16 %v170
    %v687 = vunpack.c.h.b16 %v170
    %v688 = vunpack.c.l.b16 %v171
    %v689 = vunpack.c.h.b16 %v171
    %v690 = vunpack.c.l.b16 %v172
    %v691 = vunpack.c.h.b16 %v172
    %v692 = vunpack.c.l.b16 %v173
    %v693 = vunpack.c.h.b16 %v173
    %v694 = vunpack.c.l.b16 %v174
    %v695 = vunpack.c.h.b16 %v174
    %v696 = vunpack.c.l.b16 %v175
    %v697 = vunpack.c.h.b16 %v175
    %v698 = vunpack.c.l.b16 %v176
    %v699 = vunpack.c.h.b16 %v176
    %v700 = vunpack.c.l.b16 %v177
    %v701 = vunpack.c.h.b16 %v177
    %v702 = vunpack.c.l.b16 %v178
    %v703 = vunpack.c.h.b16 %v178
    %v704 = vunpack.c.l.b16 %v179
    %v705 = vunpack.c.h.b16 %v179
    %v706 = vunpack.c.l.b16 %v180
    %v707 = vunpack.c.h.b16 %v180
    %v708 = vunpack.c.l.b16 %v181
    %v709 = vunpack.c.h.b16 %v181
    %v710 = vunpack.c.l.b16 %v182
    %v711 = vunpack.c.h.b16 %v182
    %v712 = vunpack.c.l.b16 %v183
    %v713 = vunpack.c.h.b16 %v183
    %v714 = vunpack.c.l.b16 %v184
    %v715 = vunpack.c.h.b16 %v184
    %v716 = vunpack.c.l.b16 %v185
    %v717 = vunpack.c.h.b16 %v185
    %v718 = vunpack.c.l.b16 %v186
    %v719 = vunpack.c.h.b16 %v186
    %v720 = vunpack.c.l.b16 %v187
    %v721 = vunpack.c.h.b16 %v187
    %v722 = vunpack.c.l.b16 %v188
    %v723 = vunpack.c.h.b16 %v188
    %v724 = vunpack.c.l.b16 %v189
    %v725 = vunpack.c.h.b16 %v189
    %v726 = vunpack.c.l.b16 %v190
    %v727 = vunpack.c.h.b16 %v190
    %v728 = vunpack.c.l.b16 %v191
    %v729 = vunpack.c.h.b16 %v191
    %v730 = vunpack.c.l.b16 %v192
    %v731 = vunpack.c.h.b16 %v192
    %v732 = vunpack.c.l.b16 %v193
    %v733 = vunpack.c.h.b16 %v193
    %v734 = vunpack.c.l.b16 %v194
    %v735 = vunpack.c.h.b16 %v194
    %v736 = vunpack.c.l.b16 %v195
    %v737 = vunpack.c.h.b16 %v195
    %v738 = vunpack.c.l.b16 %v196
    %v739 = vunpack.c.h.b16 %v196
    %v740 = vunpack.c.l.b16 %v197
    %v741 = vunpack.c.h.b16 %v197
    %v742 = vunpack.c.l.b16 %v198
    %v743 = vunpack.c.h.b16 %v198
    %v744 = vunpack.c.l.b16 %v199
    %v745 = vunpack.c.h.b16 %v199
    %v746 = vunpack.c.l.b16 %v200
    %v747 = vunpack.c.h.b16 %v200
    %v748 = vunpack.c.l.b16 %v201
    %v749 = vunpack.c.h.b16 %v201
    %v750 = vunpack.c.l.b16 %v202
    %v751 = vunpack.c.h.b16 %v202
    %v752 = vunpack.c.l.b16 %v203
    %v753 = vunpack.c.h.b16 %v203
    %v754 = vunpack.c.l.b16 %v204
    %v755 = vunpack.c.h.b16 %v204
    %v756 = vunpack.c.l.b16 %v205
    %v757 = vunpack.c.h.b16 %v205
    %v758 = vunpack.c.l.b16 %v206
    %v759 = vunpack.c.h.b16 %v206
    %v760 = vunpack.c.l.b16 %v207
    %v761 = vunpack.c.h.b16 %v207
    %v762 = vunpack.c.l.b16 %v208
    %v763 = vunpack.c.h.b16 %v208
    %v764 = vunpack.c.l.b16 %v209
    %v765 = vunpack.c.h.b16 %v209
    %v766 = vunpack.c.l.b16 %v210
    %v767 = vunpack.c.h.b16 %v210
    %v768 = vunpack.c.l.b16 %v211
    %v769 = vunpack.c.h.b16 %v211
    %v770 = vunpack.c.l.b16 %v212
    %v771 = vunpack.c.h.b16 %v212
    %v772 = vunpack.c.l.b16 %v213
    %v773 = vunpack.c.h.b16 %v213
    %v774 = vunpack.c.l.b16 %v214
    %v775 = vunpack.c.h.b16 %v214
    %v776 = vunpack.c.l.b16 %v215
    %v777 = vunpack.c.h.b16 %v215
    %v778 = vunpack.c.l.b16 %v216
    %v779 = vunpack.c.h.b16 %v216
    %v780 = vunpack.c.l.b16 %v217
    %v781 = vunpack.c.h.b16 %v217
    %v782 = vunpack.c.l.b16 %v218
    %v783 = vunpack.c.h.b16 %v218
    %v784 = vunpack.c.l.b16 %v219
    %v785 = vunpack.c.h.b16 %v219
    %v786 = vunpack.c.l.b16 %v220
    %v787 = vunpack.c.h.b16 %v220
    %v788 = vunpack.c.l.b16 %v221
    %v789 = vunpack.c.h.b16 %v221
    %v790 = vunpack.c.l.b16 %v222
    %v791 = vunpack.c.h.b16 %v222
    %v792 = vunpack.c.l.b16 %v223
    %v793 = vunpack.c.h.b16 %v223
    %v794 = vunpack.c.l.b16 %v224
    %v795 = vunpack.c.h.b16 %v224
    %v796 = vunpack.c.l.b16 %v225
    %v797 = vunpack.c.h.b16 %v225
    %v798 = vunpack.c.l.b16 %v226
    %v799 = vunpack.c.h.b16 %v226
    %v800 = vunpack.c.l.b16 %v227
    %v801 = vunpack.c.h.b16 %v227
    %v802 = vunpack.c.l.b16 %v228
    %v803 = vunpack.c.h.b16 %v228
    %v804 = vunpack.c.l.b16 %v229
    %v805 = vunpack.c.h.b16 %v229
    %v806 = vunpack.c.l.b16 %v230
    %v807 = vunpack.c.h.b16 %v230
    %v808 = vunpack.c.l.b16 %v231
    %v809 = vunpack.c.h.b16 %v231
    %v810 = vunpack.c.l.b16 %v232
    %v811 = vunpack.c.h.b16 %v232
    %v812 = vunpack.c.l.b16 %v233
    %v813 = vunpack.c.h.b16 %v233
    %v814 = vunpack.c.l.b16 %v234
    %v815 = vunpack.c.h.b16 %v234
    %v816 = vunpack.c.l.b16 %v235
    %v817 = vunpack.c.h.b16 %v235
    %v818 = vunpack.c.l.b16 %v236
    %v819 = vunpack.c.h.b16 %v236
    %v820 = vunpack.c.l.b16 %v237
    %v821 = vunpack.c.h.b16 %v237
    %v822 = vunpack.c.l.b16 %v238
    %v823 = vunpack.c.h.b16 %v238
    %v824 = vunpack.c.l.b16 %v239
    %v825 = vunpack.c.h.b16 %v239
    %v826 = vunpack.c.l.b16 %v240
    %v827 = vunpack.c.h.b16 %v240
    %v828 = vunpack.c.l.b16 %v241
    %v829 = vunpack.c.h.b16 %v241
    %v830 = vunpack.c.l.b16 %v242
    %v831 = vunpack.c.h.b16 %v242
    %v832 = vunpack.c.l.b16 %v243
    %v833 = vunpack.c.h.b16 %v243
    %v834 = vunpack.c.l.b16 %v244
    %v835 = vunpack.c.h.b16 %v244
    %v836 = vunpack.c.l.b16 %v245
    %v837 = vunpack.c.h.b16 %v245
    %v838 = vunpack.c.l.b16 %v246
    %v839 = vunpack.c.h.b16 %v246
    %v840 = vunpack.c.l.b16 %v247
    %v841 = vunpack.c.h.b16 %v247
    %v842 = vunpack.c.l.b16 %v248
    %v843 = vunpack.c.h.b16 %v248
    %v844 = vunpack.c.l.b16 %v249
    %v845 = vunpack.c.h.b16 %v249
    %v846 = vunpack.c.l.b16 %v250
    %v847 = vunpack.c.h.b16 %v250
    %v848 = vunpack.c.l.b16 %v251
    %v849 = vunpack.c.h.b16 %v251
    %v850 = vunpack.c.l.b16 %v252
    %v851 = vunpack.c.h.b16 %v252
    %v852 = vunpack.c.l.b16 %v253
    %v853 = vunpack.c.h.b16 %v253
    %v854 = vunpack.c.l.b16 %v254
    %v855 = vunpack.c.h.b16 %v254
    %v856 = vunpack.c.l.b16 %v255
    %v857 = vunpack.c.h.b16 %v255
    %v858 = vunpack.c.l.b16 %v256
    %v859 = vunpack.c.h.b16 %v256
    %v860 = vunpack.c.l.b16 %v257
    %v861 = vunpack.c.h.b16 %v257
    %v862 = vunpack.c.l.b16 %v258
    %v863 = vunpack.c.h.b16 %v258
    %v864 = vunpack.c.l.b16 %v259
    %v865 = vunpack.c.h.b16 %v259
    %v866 = vunpack.c.l.b16 %v260
    %v867 = vunpack.c.h.b16 %v260
    %v868 = vunpack.c.l.b16 %v261
    %v869 = vunpack.c.h.b16 %v261
    %v870 = vunpack.c.l.b16 %v262
    %v871 = vunpack.c.h.b16 %v262
    %v872 = vunpack.c.l.b16 %v263
    %v873 = vunpack.c.h.b16 %v263
    %v874 = vunpack.c.l.b16 %v264
    %v875 = vunpack.c.h.b16 %v264
    %v876 = vunpack.c.l.b16 %v265
    %v877 = vunpack.c.h.b16 %v265
    %v878 = vunpack.c.l.b16 %v266
    %v879 = vunpack.c.h.b16 %v266
    %v880 = vunpack.c.l.b16 %v267
    %v881 = vunpack.c.h.b16 %v267
    %v882 = vunpack.c.l.b16 %v268
    %v883 = vunpack.c.h.b16 %v268
    %v884 = vunpack.c.l.b16 %v269
    %v885 = vunpack.c.h.b16 %v269
    %v886 = vunpack.c.l.b16 %v270
    %v887 = vunpack.c.h.b16 %v270
    %v888 = vunpack.c.l.b16 %v271
    %v889 = vunpack.c.h.b16 %v271
    %v890 = vunpack.c.l.b16 %v272
    %v891 = vunpack.c.h.b16 %v272
    %v892 = vunpack.c.l.b16 %v273
    %v893 = vunpack.c.h.b16 %v273
    %v894 = vunpack.c.l.b16 %v274
    %v895 = vunpack.c.h.b16 %v274
    %v896 = vunpack.c.l.b16 %v275
    %v897 = vunpack.c.h.b16 %v275
    %v898 = vunpack.c.l.b16 %v276
    %v899 = vunpack.c.h.b16 %v276
    %v900 = vunpack.c.l.b16 %v277
    %v901 = vunpack.c.h.b16 %v277
    %v902 = vunpack.c.l.b16 %v278
    %v903 = vunpack.c.h.b16 %v278
    %v904 = vunpack.c.l.b16 %v279
    %v905 = vunpack.c.h.b16 %v279
    %v906 = vunpack.c.l.b16 %v280
    %v907 = vunpack.c.h.b16 %v280
    %v908 = vunpack.c.l.b16 %v281
    %v909 = vunpack.c.h.b16 %v281
    %v910 = vunpack.c.l.b16 %v282
    %v911 = vunpack.c.h.b16 %v282
    %v912 = vunpack.c.l.b16 %v283
    %v913 = vunpack.c.h.b16 %v283
    %v914 = vunpack.c.l.b16 %v284
    %v915 = vunpack.c.h.b16 %v284
    %v916 = vunpack.c.l.b16 %v285
    %v917 = vunpack.c.h.b16 %v285
    %v918 = vunpack.c.l.b16 %v286
    %v919 = vunpack.c.h.b16 %v286
    %v920 = vunpack.c.l.b16 %v287
    %v921 = vunpack.c.h.b16 %v287
    %v922 = vunpack.c.l.b16 %v288
    %v923 = vunpack.c.h.b16 %v288
    %v924 = vunpack.c.l.b16 %v289
    %v925 = vunpack.c.h.b16 %v289
    %v926 = vunpack.c.l.b16 %v290
    %v927 = vunpack.c.h.b16 %v290
    %v928 = vunpack.c.l.b16 %v291
    %v929 = vunpack.c.h.b16 %v291
    %v930 = vunpack.c.l.b16 %v292
    %v931 = vunpack.c.h.b16 %v292
    %v932 = vunpack.c.l.b16 %v293
    %v933 = vunpack.c.h.b16 %v293
    %v934 = vunpack.c.l.b16 %v294
    %v935 = vunpack.c.h.b16 %v294
    %v936 = vunpack.c.l.b16 %v295
    %v937 = vunpack.c.h.b16 %v295
    %v938 = vunpack.c.l.b16 %v296
    %v939 = vunpack.c.h.b16 %v296
    %v940 = vunpack.c.l.b16 %v297
    %v941 = vunpack.c.h.b16 %v297
    %v942 = vunpack.c.l.b16 %v298
    %v943 = vunpack.c.h.b16 %v298
    %v944 = vunpack.c.l.b16 %v299
    %v945 = vunpack.c.h.b16 %v299
    %v946 = vunpack.c.l.b16 %v300
    %v947 = vunpack.c.h.b16 %v300
    %v948 = vunpack.c.l.b16 %v301
    %v949 = vunpack.c.h.b16 %v301
    %v950 = vunpack.c.l.b16 %v302
    %v951 = vunpack.c.h.b16 %v302
    %v952 = vunpack.c.l.b16 %v303
    %v953 = vunpack.c.h.b16 %v303
    %v954 = vunpack.c.l.b16 %v304
    %v955 = vunpack.c.h.b16 %v304
    %v956 = vunpack.c.l.b16 %v305
    %v957 = vunpack.c.h.b16 %v305
    %v958 = vunpack.c.l.b16 %v306
    %v959 = vunpack.c.h.b16 %v306
    %v960 = vunpack.c.l.b16 %v307
    %v961 = vunpack.c.h.b16 %v307
    %v962 = vunpack.c.l.b16 %v308
    %v963 = vunpack.c.h.b16 %v308
    %v964 = vunpack.c.l.b16 %v309
    %v965 = vunpack.c.h.b16 %v309
    %v966 = vunpack.c.l.b16 %v310
    %v967 = vunpack.c.h.b16 %v310
    %v968 = vunpack.c.l.b16 %v311
    %v969 = vunpack.c.h.b16 %v311
    %v970 = vunpack.c.l.b16 %v312
    %v971 = vunpack.c.h.b16 %v312
    %v972 = vunpack.c.l.b16 %v313
    %v973 = vunpack.c.h.b16 %v313
    %v974 = vunpack.c.l.b16 %v314
    %v975 = vunpack.c.h.b16 %v314
    %v976 = vunpack.c.l.b16 %v315
    %v977 = vunpack.c.h.b16 %v315
    %v978 = vunpack.c.l.b16 %v316
    %v979 = vunpack.c.h.b16 %v316
    %v980 = vunpack.c.l.b16 %v317
    %v981 = vunpack.c.h.b16 %v317
    %v982 = vunpack.c.l.b16 %v318
    %v983 = vunpack.c.h.b16 %v318
    %v984 = vunpack.c.l.b16 %v319
    %v985 = vunpack.c.h.b16 %v319
    %v986 = vunpack.c.l.b16 %v320
    %v987 = vunpack.c.h.b16 %v320
    %v988 = vunpack.c.l.b16 %v321
    %v989 = vunpack.c.h.b16 %v321
    %v990 = vunpack.c.l.b16 %v322
    %v991 = vunpack.c.h.b16 %v322
    %v992 = vunpack.c.l.b16 %v323
    %v993 = vunpack.c.h.b16 %v323
    %v994 = vunpack.c.l.b16 %v324
    %v995 = vunpack.c.h.b16 %v324
    %v996 = vunpack.c.l.b16 %v325
    %v997 = vunpack.c.h.b16 %v325
    %v998 = vunpack.c.l.b16 %v326
    %v999 = vunpack.c.h.b16 %v326
    %v1000 = vunpack.c.l.b16 %v327
    %v1001 = vunpack.c.h.b16 %v327
    %v1002 = vunpack.c.l.b16 %v328
    %v1003 = vunpack.c.h.b16 %v328
    %v1004 = vunpack.c.l.b16 %v329
    %v1005 = vunpack.c.h.b16 %v329
    %v1006 = vunpack.c.l.b16 %v330
    %v1007 = vunpack.c.h.b16 %v330
    %v1008 = vunpack.c.l.b16 %v331
    %v1009 = vunpack.c.h.b16 %v331
    %v1010 = vunpack.c.l.b16 %v332
    %v1011 = vunpack.c.h.b16 %v332
    %v1012 = vunpack.c.l.b16 %v333
    %v1013 = vunpack.c.h.b16 %v333
    %v1014 = vunpack.c.l.b16 %v334
    %v1015 = vunpack.c.h.b16 %v334
    %v1016 = vunpack.c.l.b16 %v335
    %v1017 = vunpack.c.h.b16 %v335
    %v1018 = vunpack.c.l.b16 %v336
    %v1019 = vunpack.c.h.b16 %v336
    %v1020 = vunpack.c.l.b16 %v337
    %v1021 = vunpack.c.h.b16 %v337
    %v1022 = vunpack.c.l.b16 %v338
    %v1023 = vunpack.c.h.b16 %v338
    %v1024 = vunpack.c.l.b16 %v339
    %v1025 = vunpack.c.h.b16 %v339
    %v1026 = vunpack.c.l.b16 %v340
    %v1027 = vunpack.c.h.b16 %v340
    %v1028 = vunpack.c.l.b16 %v341
    %v1029 = vunpack.c.h.b16 %v341
    %v1030 = vunpack.c.l.b16 %v342
    %v1031 = vunpack.c.h.b16 %v342
    %v1032 = vunpack.c.l.b16 %v343
    %v1033 = vunpack.c.h.b16 %v343
    %v1034 = vunpack.c.l.b16 %v344
    %v1035 = vunpack.c.h.b16 %v344
    %v1036 = vunpack.c.l.b16 %v345
    %v1037 = vunpack.c.h.b16 %v345
    %v1038 = vunpack.c.l.b16 %v346
    %v1039 = vunpack.c.h.b16 %v346
    %v1040 = vpack.c.b16 %v596, %v592
    %v1041 = vpack.c.b16 %v597, %v593
    %v1042 = vpack.c.b16 %v598, %v594
    %v1043 = vpack.c.b16 %v599, %v595
    %v1044 = vpack.c.b16 %v604, %v600
    %v1045 = vpack.c.b16 %v605, %v601
    %v1046 = vpack.c.b16 %v606, %v602
    %v1047 = vpack.c.b16 %v607, %v603
    %v1048 = vpack.c.b16 %v612, %v608
    %v1049 = vpack.c.b16 %v613, %v609
    %v1050 = vpack.c.b16 %v614, %v610
    %v1051 = vpack.c.b16 %v615, %v611
    %v1052 = vpack.c.b16 %v620, %v616
    %v1053 = vpack.c.b16 %v621, %v617
    %v1054 = vpack.c.b16 %v622, %v618
    %v1055 = vpack.c.b16 %v623, %v619
    %v1056 = vpack.c.b16 %v628, %v624
    %v1057 = vpack.c.b16 %v629, %v625
    %v1058 = vpack.c.b16 %v630, %v626
    %v1059 = vpack.c.b16 %v631, %v627
    %v1060 = vpack.c.b16 %v636, %v632
    %v1061 = vpack.c.b16 %v637, %v633
    %v1062 = vpack.c.b16 %v638, %v634
    %v1063 = vpack.c.b16 %v639, %v635
    %v1064 = vpack.c.b16 %v644, %v640
    %v1065 = vpack.c.b16 %v645, %v641
    %v1066 = vpack.c.b16 %v646, %v642
    %v1067 = vpack.c.b16 %v647, %v643
    %v1068 = vpack.c.b16 %v652, %v648
    %v1069 = vpack.c.b16 %v653, %v649
    %v1070 = vpack.c.b16 %v654, %v650
    %v1071 = vpack.c.b16 %v655, %v651
    %v1072 = vpack.c.b16 %v660, %v656
    %v1073 = vpack.c.b16 %v661, %v657
    %v1074 = vpack.c.b16 %v662, %v658
    %v1075 = vpack.c.b16 %v663, %v659
    %v1076 = vpack.c.b16 %v668, %v664
    %v1077 = vpack.c.b16 %v669, %v665
    %v1078 = vpack.c.b16 %v670, %v666
    %v1079 = vpack.c.b16 %v671, %v667
    %v1080 = vpack.c.b16 %v676, %v672
    %v1081 = vpack.c.b16 %v677, %v673
    %v1082 = vpack.c.b16 %v678, %v674
    %v1083 = vpack.c.b16 %v679, %v675
    %v1084 = vpack.c.b16 %v684, %v680
    %v1085 = vpack.c.b16 %v685, %v681
    %v1086 = vpack.c.b16 %v686, %v682
    %v1087 = vpack.c.b16 %v687, %v683
    %v1088 = vpack.c.b16 %v692, %v688
    %v1089 = vpack.c.b16 %v693, %v689
    %v1090 = vpack.c.b16 %v694, %v690
    %v1091 = vpack.c.b16 %v695, %v691
    %v1092 = vpack.c.b16 %v700, %v696
    %v1093 = vpack.c.b16 %v701, %v697
    %v1094 = vpack.c.b16 %v702, %v698
    %v1095 = vpack.c.b16 %v703, %v699
    %v1096 = vpack.c.b16 %v708, %v704
    %v1097 = vpack.c.b16 %v709, %v705
    %v1098 = vpack.c.b16 %v710, %v706
    %v1099 = vpack.c.b16 %v711, %v707
    %v1100 = vpack.c.b16 %v716, %v712
    %v1101 = vpack.c.b16 %v717, %v713
    %v1102 = vpack.c.b16 %v718, %v714
    %v1103 = vpack.c.b16 %v719, %v715
    %v1104 = vpack.c.b16 %v724, %v720
    %v1105 = vpack.c.b16 %v725, %v721
    %v1106 = vpack.c.b16 %v726, %v722
    %v1107 = vpack.c.b16 %v727, %v723
    %v1108 = vpack.c.b16 %v732, %v728
    %v1109 = vpack.c.b16 %v733, %v729
    %v1110 = vpack.c.b16 %v734, %v730
    %v1111 = vpack.c.b16 %v735, %v731
    %v1112 = vpack.c.b16 %v740, %v736
    %v1113 = vpack.c.b16 %v741, %v737
    %v1114 = vpack.c.b16 %v742, %v738
    %v1115 = vpack.c.b16 %v743, %v739
    %v1116 = vpack.c.b16 %v748, %v744
    %v1117 = vpack.c.b16 %v749, %v745
    %v1118 = vpack.c.b16 %v750, %v746
    %v1119 = vpack.c.b16 %v751, %v747
    %v1120 = vpack.c.b16 %v756, %v752
    %v1121 = vpack.c.b16 %v757, %v753
    %v1122 = vpack.c.b16 %v758, %v754
    %v1123 = vpack.c.b16 %v759, %v755
    %v1124 = vpack.c.b16 %v764, %v760
    %v1125 = vpack.c.b16 %v765, %v761
    %v1126 = vpack.c.b16 %v766, %v762
    %v1127 = vpack.c.b16 %v767, %v763
    %v1128 = vpack.c.b16 %v772, %v768
    %v1129 = vpack.c.b16 %v773, %v769
    %v1130 = vpack.c.b16 %v774, %v770
    %v1131 = vpack.c.b16 %v775, %v771
    %v1132 = vpack.c.b16 %v780, %v776
    %v1133 = vpack.c.b16 %v781, %v777
    %v1134 = vpack.c.b16 %v782, %v778
    %v1135 = vpack.c.b16 %v783, %v779
    %v1136 = vpack.c.b16 %v788, %v784
    %v1137 = vpack.c.b16 %v789, %v785
    %v1138 = vpack.c.b16 %v790, %v786
    %v1139 = vpack.c.b16 %v791, %v787
    %v1140 = vpack.c.b16 %v796, %v792
    %v1141 = vpack.c.b16 %v797, %v793
    %v1142 = vpack.c.b16 %v798, %v794
    %v1143 = vpack.c.b16 %v799, %v795
    %v1144 = vpack.c.b16 %v804, %v800
    %v1145 = vpack.c.b16 %v805, %v801
    %v1146 = vpack.c.b16 %v806, %v802
    %v1147 = vpack.c.b16 %v807, %v803
    %v1148 = vpack.c.b16 %v812, %v808
    %v1149 = vpack.c.b16 %v813, %v809
    %v1150 = vpack.c.b16 %v814, %v810
    %v1151 = vpack.c.b16 %v815, %v811
    %v1152 = vpack.c.b16 %v820, %v816
    %v1153 = vpack.c.b16 %v821, %v817
    %v1154 = vpack.c.b16 %v822, %v818
    %v1155 = vpack.c.b16 %v823, %v819
    %v1156 = vpack.c.b16 %v828, %v824
    %v1157 = vpack.c.b16 %v829, %v825
    %v1158 = vpack.c.b16 %v830, %v826
    %v1159 = vpack.c.b16 %v831, %v827
    %v1160 = vpack.c.b16 %v836, %v832
    %v1161 = vpack.c.b16 %v837, %v833
    %v1162 = vpack.c.b16 %v838, %v834
    %v1163 = vpack.c.b16 %v839, %v835
    %v1164 = vpack.c.b16 %v844, %v840
    %v1165 = vpack.c.b16 %v845, %v841
    %v1166 = vpack.c.b16 %v846, %v842
    %v1167 = vpack.c.b16 %v847, %v843
    %v1168 = vpack.c.b16 %v852, %v848
    %v1169 = vpack.c.b16 %v853, %v849
    %v1170 = vpack.c.b16 %v854, %v850
    %v1171 = vpack.c.b16 %v855, %v851
    %v1172 = vpack.c.b16 %v860, %v856
    %v1173 = vpack.c.b16 %v861, %v857
    %v1174 = vpack.c.b16 %v862, %v858
    %v1175 = vpack.c.b16 %v863, %v859
    %v1176 = vpack.c.b16 %v868, %v864
    %v1177 = vpack.c.b16 %v869, %v865
    %v1178 = vpack.c.b16 %v870, %v866
    %v1179 = vpack.c.b16 %v871, %v867
    %v1180 = vpack.c.b16 %v876, %v872
    %v1181 = vpack.c.b16 %v877, %v873
    %v1182 = vpack.c.b16 %v878, %v874
    %v1183 = vpack.c.b16 %v879, %v875
    %v1184 = vpack.c.b16 %v884, %v880
    %v1185 = vpack.c.b16 %v885, %v881
    %v1186 = vpack.c.b16 %v886, %v882
    %v1187 = vpack.c.b16 %v887, %v883
    %v1188 = vpack.c.b16 %v892, %v888
    %v1189 = vpack.c.b16 %v893, %v889
    %v1190 = vpack.c.b16 %v894, %v890
    %v1191 = vpack.c.b16 %v895, %v891
    %v1192 = vpack.c.b16 %v900, %v896
    %v1193 = vpack.c.b16 %v901, %v897
    %v1194 = vpack.c.b16 %v902, %v898
    %v1195 = vpack.c.b16 %v903, %v899
    %v1196 = vpack.c.b16 %v908, %v904
    %v1197 = vpack.c.b16 %v909, %v905
    %v1198 = vpack.c.b16 %v910, %v906
    %v1199 = vpack.c.b16 %v911, %v907
    %v1200 = vpack.c.b16 %v916, %v912
    %v1201 = vpack.c.b16 %v917, %v913
    %v1202 = vpack.c.b16 %v918, %v914
    %v1203 = vpack.c.b16 %v919, %v915
    %v1204 = vpack.c.b16 %v924, %v920
    %v1205 = vpack.c.b16 %v925, %v921
    %v1206 = vpack.c.b16 %v926, %v922
    %v1207 = vpack.c.b16 %v927, %v923
    %v1208 = vpack.c.b16 %v932, %v928
    %v1209 = vpack.c.b16 %v933, %v929
    %v1210 = vpack.c.b16 %v934, %v930
    %v1211 = vpack.c.b16 %v935, %v931
    %v1212 = vpack.c.b16 %v940, %v936
    %v1213 = vpack.c.b16 %v941, %v937
    %v1214 = vpack.c.b16 %v942, %v938
    %v1215 = vpack.c.b16 %v943, %v939
    %v1216 = vpack.c.b16 %v948, %v944
    %v1217 = vpack.c.b16 %v949, %v945
    %v1218 = vpack.c.b16 %v950, %v946
    %v1219 = vpack.c.b16 %v951, %v947
    %v1220 = vpack.c.b16 %v956, %v952
    %v1221 = vpack.c.b16 %v957, %v953
    %v1222 = vpack.c.b16 %v958, %v954
    %v1223 = vpack.c.b16 %v959, %v955
    %v1224 = vpack.c.b16 %v964, %v960
    %v1225 = vpack.c.b16 %v965, %v961
    %v1226 = vpack.c.b16 %v966, %v962
    %v1227 = vpack.c.b16 %v967, %v963
    %v1228 = vpack.c.b16 %v972, %v968
    %v1229 = vpack.c.b16 %v973, %v969
    %v1230 = vpack.c.b16 %v974, %v970
    %v1231 = vpack.c.b16 %v975, %v971
    %v1232 = vpack.c.b16 %v980, %v976
    %v1233 = vpack.c.b16 %v981, %v977
    %v1234 = vpack.c.b16 %v982, %v978
    %v1235 = vpack.c.b16 %v983, %v979
    %v1236 = vpack.c.b16 %v988, %v984
    %v1237 = vpack.c.b16 %v989, %v985
    %v1238 = vpack.c.b16 %v990, %v986
    %v1239 = vpack.c.b16 %v991, %v987
    %v1240 = vpack.c.b16 %v996, %v992
    %v1241 = vpack.c.b16 %v997, %v993
    %v1242 = vpack.c.b16 %v998, %v994
    %v1243 = vpack.c.b16 %v999, %v995
    %v1244 = vpack.c.b16 %v1004, %v1000
    %v1245 = vpack.c.b16 %v1005, %v1001
    %v1246 = vpack.c.b16 %v1006, %v1002
    %v1247 = vpack.c.b16 %v1007, %v1003
    %v1248 = vpack.c.b16 %v1012, %v1008
    %v1249 = vpack.c.b16 %v1013, %v1009
    %v1250 = vpack.c.b16 %v1014, %v1010
    %v1251 = vpack.c.b16 %v1015, %v1011
    %v1252 = vpack.c.b16 %v1020, %v1016
    %v1253 = vpack.c.b16 %v1021, %v1017
    %v1254 = vpack.c.b16 %v1022, %v1018
    %v1255 = vpack.c.b16 %v1023, %v1019
    %v1256 = vpack.c.b16 %v1028, %v1024
    %v1257 = vpack.c.b16 %v1029, %v1025
    %v1258 = vpack.c.b16 %v1030, %v1026
    %v1259 = vpack.c.b16 %v1031, %v1027
    %v1260 = vpack.c.b16 %v1036, %v1032
    %v1261 = vpack.c.b16 %v1037, %v1033
    %v1262 = vpack.c.b16 %v1038, %v1034
    %v1263 = vpack.c.b16 %v1039, %v1035
    %1488 = vmatprep.subr.bf16.mxu0 %v1041
    %1489 = vmatpush1.bf16.msra.mxu0 %v1040
    %1490 = vmatprep.subr.bf16.mxu0 %v1045
    %1491 = vmatpush1.bf16.msra.mxu0 %v1044
    %1492 = vmatprep.subr.bf16.mxu0 %v1049
    %1493 = vmatpush1.bf16.msra.mxu0 %v1048
    %1494 = vmatprep.subr.bf16.mxu0 %v1053
    %1495 = vmatpush1.bf16.msra.mxu0 %v1052
    %1496 = vmatprep.subr.bf16.mxu0 %v1057
    %1497 = vmatpush1.bf16.msra.mxu0 %v1056
    %1498 = vmatprep.subr.bf16.mxu0 %v1061
    %1499 = vmatpush1.bf16.msra.mxu0 %v1060
    %1500 = vmatprep.subr.bf16.mxu0 %v1065
    %1501 = vmatpush1.bf16.msra.mxu0 %v1064
    %1502 = vmatprep.subr.bf16.mxu0 %v1069
    %1503 = vmatpush1.bf16.msra.mxu0 %v1068
    %1504 = vmatprep.subr.bf16.mxu0 %v1073
    %1505 = vmatpush1.bf16.msra.mxu0 %v1072
    %1506 = vmatprep.subr.bf16.mxu0 %v1077
    %1507 = vmatpush1.bf16.msra.mxu0 %v1076
    %1508 = vmatprep.subr.bf16.mxu0 %v1081
    %1509 = vmatpush1.bf16.msra.mxu0 %v1080
    %1510 = vmatprep.subr.bf16.mxu0 %v1085
    %1511 = vmatpush1.bf16.msra.mxu0 %v1084
    %1512 = vmatprep.subr.bf16.mxu0 %v1089
    %1513 = vmatpush1.bf16.msra.mxu0 %v1088
    %1514 = vmatprep.subr.bf16.mxu0 %v1093
    %1515 = vmatpush1.bf16.msra.mxu0 %v1092
    %1516 = vmatprep.subr.bf16.mxu0 %v1097
    %1517 = vmatpush1.bf16.msra.mxu0 %v1096
    %1518 = vmatprep.subr.bf16.mxu0 %v1101
    %1519 = vmatpush1.bf16.msra.mxu0 %v1100
    %1520 = vmatprep.mubr.bf16.mxu0 %v117
    %1521 = vmatmul.mubr.bf16.gmra.mrb[0].mxu0 %v116
    %v1522 = vpop.f32.mrb[0].mxu0
    %v1523 = vadd.f32 %v351, %v1522
    %v1524 = vpop.f32.mrb[0].mxu0
    %v1525 = vadd.f32 %v355, %v1524
    %v1526 = vpop.f32.mrb[0].mxu0
    %v1527 = vpop.f32.mrb[0].mxu0
    %1528 = vdwg.mxu0
    %1529 = vmatprep.subr.bf16.mxu0 %v1105
    %1530 = vmatpush1.bf16.msra.mxu0 %v1104
    %1531 = vmatprep.subr.bf16.mxu0 %v1109
    %1532 = vmatpush1.bf16.msra.mxu0 %v1108
    %1533 = vmatprep.subr.bf16.mxu0 %v1113
    %1534 = vmatpush1.bf16.msra.mxu0 %v1112
    %1535 = vmatprep.subr.bf16.mxu0 %v1117
    %1536 = vmatpush1.bf16.msra.mxu0 %v1116
    %1537 = vmatprep.subr.bf16.mxu0 %v1121
    %1538 = vmatpush1.bf16.msra.mxu0 %v1120
    %1539 = vmatprep.subr.bf16.mxu0 %v1125
    %1540 = vmatpush1.bf16.msra.mxu0 %v1124
    %1541 = vmatprep.subr.bf16.mxu0 %v1129
    %1542 = vmatpush1.bf16.msra.mxu0 %v1128
    %1543 = vmatprep.subr.bf16.mxu0 %v1133
    %1544 = vmatpush1.bf16.msra.mxu0 %v1132
    %1545 = vmatprep.subr.bf16.mxu0 %v1137
    %1546 = vmatpush1.bf16.msra.mxu0 %v1136
    %1547 = vmatprep.subr.bf16.mxu0 %v1141
    %1548 = vmatpush1.bf16.msra.mxu0 %v1140
    %1549 = vmatprep.subr.bf16.mxu0 %v1145
    %1550 = vmatpush1.bf16.msra.mxu0 %v1144
    %1551 = vmatprep.subr.bf16.mxu0 %v1149
    %1552 = vmatpush1.bf16.msra.mxu0 %v1148
    %1553 = vmatprep.subr.bf16.mxu0 %v1153
    %1554 = vmatpush1.bf16.msra.mxu0 %v1152
    %1555 = vmatprep.subr.bf16.mxu0 %v1157
    %1556 = vmatpush1.bf16.msra.mxu0 %v1156
    %1557 = vmatprep.subr.bf16.mxu0 %v1161
    %1558 = vmatpush1.bf16.msra.mxu0 %v1160
    %1559 = vmatprep.subr.bf16.mxu0 %v1165
    %1560 = vmatpush1.bf16.msra.mxu0 %v1164
    %1561 = vmatprep.mubr.bf16.mxu0 %v119
    %1562 = vmatmul.mubr.bf16.gmra.mrb[0].mxu0 %v118
    %v1563 = vpop.f32.mrb[0].mxu0
    %v1564 = vadd.f32 %v1523, %v1563
    %v1565 = vpop.f32.mrb[0].mxu0
    %v1566 = vadd.f32 %v1525, %v1565
    %v1567 = vpop.f32.mrb[0].mxu0
    %v1568 = vpop.f32.mrb[0].mxu0
    %1569 = vdwg.mxu0
    %1570 = vmatprep.subr.bf16.mxu0 %v1169
    %1571 = vmatpush1.bf16.msra.mxu0 %v1168
    %1572 = vmatprep.subr.bf16.mxu0 %v1173
    %1573 = vmatpush1.bf16.msra.mxu0 %v1172
    %1574 = vmatprep.subr.bf16.mxu0 %v1177
    %1575 = vmatpush1.bf16.msra.mxu0 %v1176
    %1576 = vmatprep.subr.bf16.mxu0 %v1181
    %1577 = vmatpush1.bf16.msra.mxu0 %v1180
    %1578 = vmatprep.subr.bf16.mxu0 %v1185
    %1579 = vmatpush1.bf16.msra.mxu0 %v1184
    %1580 = vmatprep.subr.bf16.mxu0 %v1189
    %1581 = vmatpush1.bf16.msra.mxu0 %v1188
    %1582 = vmatprep.subr.bf16.mxu0 %v1193
    %1583 = vmatpush1.bf16.msra.mxu0 %v1192
    %1584 = vmatprep.subr.bf16.mxu0 %v1197
    %1585 = vmatpush1.bf16.msra.mxu0 %v1196
    %1586 = vmatprep.subr.bf16.mxu0 %v1201
    %1587 = vmatpush1.bf16.msra.mxu0 %v1200
    %1588 = vmatprep.subr.bf16.mxu0 %v1205
    %1589 = vmatpush1.bf16.msra.mxu0 %v1204
    %1590 = vmatprep.subr.bf16.mxu0 %v1209
    %1591 = vmatpush1.bf16.msra.mxu0 %v1208
    %1592 = vmatprep.subr.bf16.mxu0 %v1213
    %1593 = vmatpush1.bf16.msra.mxu0 %v1212
    %1594 = vmatprep.subr.bf16.mxu0 %v1217
    %1595 = vmatpush1.bf16.msra.mxu0 %v1216
    %1596 = vmatprep.subr.bf16.mxu0 %v1221
    %1597 = vmatpush1.bf16.msra.mxu0 %v1220
    %1598 = vmatprep.subr.bf16.mxu0 %v1225
    %1599 = vmatpush1.bf16.msra.mxu0 %v1224
    %1600 = vmatprep.subr.bf16.mxu0 %v1229
    %1601 = vmatpush1.bf16.msra.mxu0 %v1228
    %1602 = vmatprep.mubr.bf16.mxu0 %v121
    %1603 = vmatmul.mubr.bf16.gmra.mrb[0].mxu0 %v120
    %v1604 = vpop.f32.mrb[0].mxu0
    %v1605 = vadd.f32 %v1564, %v1604
    %v1606 = vpop.f32.mrb[0].mxu0
    %v1607 = vadd.f32 %v1566, %v1606
    %v1608 = vpop.f32.mrb[0].mxu0
    %v1609 = vpop.f32.mrb[0].mxu0
    %1610 = vdwg.mxu0
    %1611 = vmatprep.subr.bf16.mxu0 %v1233
    %1612 = vmatpush1.bf16.msra.mxu0 %v1232
    %1613 = vmatprep.subr.bf16.mxu0 %v1237
    %1614 = vmatpush1.bf16.msra.mxu0 %v1236
    %1615 = vmatprep.subr.bf16.mxu0 %v1241
    %1616 = vmatpush1.bf16.msra.mxu0 %v1240
    %1617 = vmatprep.subr.bf16.mxu0 %v1245
    %1618 = vmatpush1.bf16.msra.mxu0 %v1244
    %1619 = vmatprep.subr.bf16.mxu0 %v1249
    %1620 = vmatpush1.bf16.msra.mxu0 %v1248
    %1621 = vmatprep.subr.bf16.mxu0 %v1253
    %1622 = vmatpush1.bf16.msra.mxu0 %v1252
    %1623 = vmatprep.subr.bf16.mxu0 %v1257
    %1624 = vmatpush1.bf16.msra.mxu0 %v1256
    %1625 = vmatprep.subr.bf16.mxu0 %v1261
    %1626 = vmatpush1.bf16.msra.mxu0 %v1260
    %1627 = vmatprep.subr.bf16.mxu0 0
    %1628 = vmatpush1.bf16.msra.mxu0 0
    %1629 = vmatprep.subr.bf16.mxu0 0
    %1630 = vmatpush1.bf16.msra.mxu0 0
    %1631 = vmatprep.subr.bf16.mxu0 0
    %1632 = vmatpush1.bf16.msra.mxu0 0
    %1633 = vmatprep.subr.bf16.mxu0 0
    %1634 = vmatpush1.bf16.msra.mxu0 0
    %1635 = vmatprep.subr.bf16.mxu0 0
    %1636 = vmatpush1.bf16.msra.mxu0 0
    %1637 = vmatprep.subr.bf16.mxu0 0
    %1638 = vmatpush1.bf16.msra.mxu0 0
    %1639 = vmatprep.subr.bf16.mxu0 0
    %1640 = vmatpush1.bf16.msra.mxu0 0
    %1641 = vmatprep.subr.bf16.mxu0 0
    %1642 = vmatpush1.bf16.msra.mxu0 0
    %1643 = vmatprep.mubr.bf16.mxu0 0
    %1644 = vmatmul.mubr.bf16.gmra.mrb[0].mxu0 %v122
    %v1645 = vpop.f32.mrb[0].mxu0
    %v1646 = vadd.f32 %v1605, %v1645
    %v1647 = vpop.f32.mrb[0].mxu0
    %v1648 = vadd.f32 %v1607, %v1647
    %v1649 = vpop.f32.mrb[0].mxu0
    %v1650 = vpop.f32.mrb[0].mxu0
    %1651 = vdwg.mxu0
    %1652 = vmatprep.subr.bf16.mxu0 %v1043
    %1653 = vmatpush1.bf16.msra.mxu0 %v1042
    %1654 = vmatprep.subr.bf16.mxu0 %v1047
    %1655 = vmatpush1.bf16.msra.mxu0 %v1046
    %1656 = vmatprep.subr.bf16.mxu0 %v1051
    %1657 = vmatpush1.bf16.msra.mxu0 %v1050
    %1658 = vmatprep.subr.bf16.mxu0 %v1055
    %1659 = vmatpush1.bf16.msra.mxu0 %v1054
    %1660 = vmatprep.subr.bf16.mxu0 %v1059
    %1661 = vmatpush1.bf16.msra.mxu0 %v1058
    %1662 = vmatprep.subr.bf16.mxu0 %v1063
    %1663 = vmatpush1.bf16.msra.mxu0 %v1062
    %1664 = vmatprep.subr.bf16.mxu0 %v1067
    %1665 = vmatpush1.bf16.msra.mxu0 %v1066
    %1666 = vmatprep.subr.bf16.mxu0 %v1071
    %1667 = vmatpush1.bf16.msra.mxu0 %v1070
    %1668 = vmatprep.subr.bf16.mxu0 %v1075
    %1669 = vmatpush1.bf16.msra.mxu0 %v1074
    %1670 = vmatprep.subr.bf16.mxu0 %v1079
    %1671 = vmatpush1.bf16.msra.mxu0 %v1078
    %1672 = vmatprep.subr.bf16.mxu0 %v1083
    %1673 = vmatpush1.bf16.msra.mxu0 %v1082
    %1674 = vmatprep.subr.bf16.mxu0 %v1087
    %1675 = vmatpush1.bf16.msra.mxu0 %v1086
    %1676 = vmatprep.subr.bf16.mxu0 %v1091
    %1677 = vmatpush1.bf16.msra.mxu0 %v1090
    %1678 = vmatprep.subr.bf16.mxu0 %v1095
    %1679 = vmatpush1.bf16.msra.mxu0 %v1094
    %1680 = vmatprep.subr.bf16.mxu0 %v1099
    %1681 = vmatpush1.bf16.msra.mxu0 %v1098
    %1682 = vmatprep.subr.bf16.mxu0 %v1103
    %1683 = vmatpush1.bf16.msra.mxu0 %v1102
    %1684 = vmatprep.mubr.bf16.mxu0 %v117
    %1685 = vmatmul.mubr.bf16.gmra.mrb[0].mxu0 %v116
    %v1686 = vpop.f32.mrb[0].mxu0
    %v1687 = vadd.f32 %v359, %v1686
    %v1688 = vpop.f32.mrb[0].mxu0
    %v1689 = vadd.f32 %v363, %v1688
    %v1690 = vpop.f32.mrb[0].mxu0
    %v1691 = vpop.f32.mrb[0].mxu0
    %1692 = vdwg.mxu0
    %1693 = vmatprep.subr.bf16.mxu0 %v1107
    %1694 = vmatpush1.bf16.msra.mxu0 %v1106
    %1695 = vmatprep.subr.bf16.mxu0 %v1111
    %1696 = vmatpush1.bf16.msra.mxu0 %v1110
    %1697 = vmatprep.subr.bf16.mxu0 %v1115
    %1698 = vmatpush1.bf16.msra.mxu0 %v1114
    %1699 = vmatprep.subr.bf16.mxu0 %v1119
    %1700 = vmatpush1.bf16.msra.mxu0 %v1118
    %1701 = vmatprep.subr.bf16.mxu0 %v1123
    %1702 = vmatpush1.bf16.msra.mxu0 %v1122
    %1703 = vmatprep.subr.bf16.mxu0 %v1127
    %1704 = vmatpush1.bf16.msra.mxu0 %v1126
    %1705 = vmatprep.subr.bf16.mxu0 %v1131
    %1706 = vmatpush1.bf16.msra.mxu0 %v1130
    %1707 = vmatprep.subr.bf16.mxu0 %v1135
    %1708 = vmatpush1.bf16.msra.mxu0 %v1134
    %1709 = vmatprep.subr.bf16.mxu0 %v1139
    %1710 = vmatpush1.bf16.msra.mxu0 %v1138
    %1711 = vmatprep.subr.bf16.mxu0 %v1143
    %1712 = vmatpush1.bf16.msra.mxu0 %v1142
    %1713 = vmatprep.subr.bf16.mxu0 %v1147
    %1714 = vmatpush1.bf16.msra.mxu0 %v1146
    %1715 = vmatprep.subr.bf16.mxu0 %v1151
    %1716 = vmatpush1.bf16.msra.mxu0 %v1150
    %1717 = vmatprep.subr.bf16.mxu0 %v1155
    %1718 = vmatpush1.bf16.msra.mxu0 %v1154
    %1719 = vmatprep.subr.bf16.mxu0 %v1159
    %1720 = vmatpush1.bf16.msra.mxu0 %v1158
    %1721 = vmatprep.subr.bf16.mxu0 %v1163
    %1722 = vmatpush1.bf16.msra.mxu0 %v1162
    %1723 = vmatprep.subr.bf16.mxu0 %v1167
    %1724 = vmatpush1.bf16.msra.mxu0 %v1166
    %1725 = vmatprep.mubr.bf16.mxu0 %v119
    %1726 = vmatmul.mubr.bf16.gmra.mrb[0].mxu0 %v118
    %v1727 = vpop.f32.mrb[0].mxu0
    %v1728 = vadd.f32 %v1687, %v1727
    %v1729 = vpop.f32.mrb[0].mxu0
    %v1730 = vadd.f32 %v1689, %v1729
    %v1731 = vpop.f32.mrb[0].mxu0
    %v1732 = vpop.f32.mrb[0].mxu0
    %1733 = vdwg.mxu0
    %1734 = vmatprep.subr.bf16.mxu0 %v1171
    %1735 = vmatpush1.bf16.msra.mxu0 %v1170
    %1736 = vmatprep.subr.bf16.mxu0 %v1175
    %1737 = vmatpush1.bf16.msra.mxu0 %v1174
    %1738 = vmatprep.subr.bf16.mxu0 %v1179
    %1739 = vmatpush1.bf16.msra.mxu0 %v1178
    %1740 = vmatprep.subr.bf16.mxu0 %v1183
    %1741 = vmatpush1.bf16.msra.mxu0 %v1182
    %1742 = vmatprep.subr.bf16.mxu0 %v1187
    %1743 = vmatpush1.bf16.msra.mxu0 %v1186
    %1744 = vmatprep.subr.bf16.mxu0 %v1191
    %1745 = vmatpush1.bf16.msra.mxu0 %v1190
    %1746 = vmatprep.subr.bf16.mxu0 %v1195
    %1747 = vmatpush1.bf16.msra.mxu0 %v1194
    %1748 = vmatprep.subr.bf16.mxu0 %v1199
    %1749 = vmatpush1.bf16.msra.mxu0 %v1198
    %1750 = vmatprep.subr.bf16.mxu0 %v1203
    %1751 = vmatpush1.bf16.msra.mxu0 %v1202
    %1752 = vmatprep.subr.bf16.mxu0 %v1207
    %1753 = vmatpush1.bf16.msra.mxu0 %v1206
    %1754 = vmatprep.subr.bf16.mxu0 %v1211
    %1755 = vmatpush1.bf16.msra.mxu0 %v1210
    %1756 = vmatprep.subr.bf16.mxu0 %v1215
    %1757 = vmatpush1.bf16.msra.mxu0 %v1214
    %1758 = vmatprep.subr.bf16.mxu0 %v1219
    %1759 = vmatpush1.bf16.msra.mxu0 %v1218
    %1760 = vmatprep.subr.bf16.mxu0 %v1223
    %1761 = vmatpush1.bf16.msra.mxu0 %v1222
    %1762 = vmatprep.subr.bf16.mxu0 %v1227
    %1763 = vmatpush1.bf16.msra.mxu0 %v1226
    %1764 = vmatprep.subr.bf16.mxu0 %v1231
    %1765 = vmatpush1.bf16.msra.mxu0 %v1230
    %1766 = vmatprep.mubr.bf16.mxu0 %v121
    %1767 = vmatmul.mubr.bf16.gmra.mrb[0].mxu0 %v120
    %v1768 = vpop.f32.mrb[0].mxu0
    %v1769 = vadd.f32 %v1728, %v1768
    %v1770 = vpop.f32.mrb[0].mxu0
    %v1771 = vadd.f32 %v1730, %v1770
    %v1772 = vpop.f32.mrb[0].mxu0
    %v1773 = vpop.f32.mrb[0].mxu0
    %1774 = vdwg.mxu0
    %1775 = vmatprep.subr.bf16.mxu0 %v1235
    %1776 = vmatpush1.bf16.msra.mxu0 %v1234
    %1777 = vmatprep.subr.bf16.mxu0 %v1239
    %1778 = vmatpush1.bf16.msra.mxu0 %v1238
    %1779 = vmatprep.subr.bf16.mxu0 %v1243
    %1780 = vmatpush1.bf16.msra.mxu0 %v1242
    %1781 = vmatprep.subr.bf16.mxu0 %v1247
    %1782 = vmatpush1.bf16.msra.mxu0 %v1246
    %1783 = vmatprep.subr.bf16.mxu0 %v1251
    %1784 = vmatpush1.bf16.msra.mxu0 %v1250
    %1785 = vmatprep.subr.bf16.mxu0 %v1255
    %1786 = vmatpush1.bf16.msra.mxu0 %v1254
    %1787 = vmatprep.subr.bf16.mxu0 %v1259
    %1788 = vmatpush1.bf16.msra.mxu0 %v1258
    %1789 = vmatprep.subr.bf16.mxu0 %v1263
    %1790 = vmatpush1.bf16.msra.mxu0 %v1262
    %1791 = vmatprep.subr.bf16.mxu0 0
    %1792 = vmatpush1.bf16.msra.mxu0 0
    %1793 = vmatprep.subr.bf16.mxu0 0
    %1794 = vmatpush1.bf16.msra.mxu0 0
    %1795 = vmatprep.subr.bf16.mxu0 0
    %1796 = vmatpush1.bf16.msra.mxu0 0
    %1797 = vmatprep.subr.bf16.mxu0 0
    %1798 = vmatpush1.bf16.msra.mxu0 0
    %1799 = vmatprep.subr.bf16.mxu0 0
    %1800 = vmatpush1.bf16.msra.mxu0 0
    %1801 = vmatprep.subr.bf16.mxu0 0
    %1802 = vmatpush1.bf16.msra.mxu0 0
    %1803 = vmatprep.subr.bf16.mxu0 0
    %1804 = vmatpush1.bf16.msra.mxu0 0
    %1805 = vmatprep.subr.bf16.mxu0 0
    %1806 = vmatpush1.bf16.msra.mxu0 0
    %1807 = vmatprep.mubr.bf16.mxu0 0
    %1808 = vmatmul.mubr.bf16.gmra.mrb[0].mxu0 %v122
    %v1809 = vpop.f32.mrb[0].mxu0
    %v1810 = vadd.f32 %v1769, %v1809
    %v1811 = vpop.f32.mrb[0].mxu0
    %v1812 = vadd.f32 %v1771, %v1811
    %v1813 = vpop.f32.mrb[0].mxu0
    %v1814 = vpop.f32.mrb[0].mxu0
    %1815 = vdwg.mxu0
    %v1816 = vmax.f32 %v1646, 0.0
    %v1817 = vmax.f32 %v1648, 0.0
    %v1818 = vmax.f32 %v1810, 0.0
    %v1819 = vmax.f32 %v1812, 0.0
    %v1820 = vld [vmem:[%s6 + $0x4] sm:$0x3]
    %v1821 = vpack.c.bf16 %v1816, %v1816
    %v1822 = vpack.c.bf16 %v1817, %v1817
    %v1823 = vpack.c.bf16 %v1818, %v1818
    %v1824 = vpack.c.bf16 %v1819, %v1819
    %v1825 = vld [vmem:[#allocation7] sm:$0xff]
    %v1826 = vld [vmem:[#allocation7 + $0x8] sm:$0xff]
    %v1827 = vld [vmem:[#allocation7 + $0x10] sm:$0xff]
    %v1828 = vld [vmem:[#allocation7 + $0x18] sm:$0xff]
    %v1829 = vld [vmem:[#allocation7 + $0x20] sm:$0xff]
    %v1830 = vld [vmem:[#allocation7 + $0x28] sm:$0xff]
    %v1831 = vld [vmem:[#allocation7 + $0x30] sm:$0xff]
    %v1832 = vld [vmem:[#allocation7 + $0x38] sm:$0xff]
    %v1833 = vld [vmem:[#allocation7 + $0x40] sm:$0xff]
    %v1834 = vld [vmem:[#allocation7 + $0x48] sm:$0xff]
    %v1835 = vld [vmem:[#allocation7 + $0x50] sm:$0xff]
    %v1836 = vld [vmem:[#allocation7 + $0x58] sm:$0xff]
    %v1837 = vld [vmem:[#allocation7 + $0x60] sm:$0xff]
    %v1838 = vld [vmem:[#allocation7 + $0x68] sm:$0xff]
    %v1839 = vld [vmem:[#allocation7 + $0x70] sm:$0xff]
    %v1840 = vld [vmem:[#allocation7 + $0x78] sm:$0xff]
    %v1841 = vld [vmem:[#allocation7 + $0x80] sm:$0xff]
    %v1842 = vld [vmem:[#allocation7 + $0x88] sm:$0xff]
    %v1843 = vld [vmem:[#allocation7 + $0x90] sm:$0xff]
    %v1844 = vld [vmem:[#allocation7 + $0x98] sm:$0xff]
    %v1845 = vld [vmem:[#allocation7 + $0xa0] sm:$0xff]
    %v1846 = vld [vmem:[#allocation7 + $0xa8] sm:$0xff]
    %v1847 = vld [vmem:[#allocation7 + $0xb0] sm:$0xff]
    %v1848 = vld [vmem:[#allocation7 + $0xb8] sm:$0xff]
    %v1849 = vld [vmem:[#allocation7 + $0xc0] sm:$0xff]
    %v1850 = vld [vmem:[#allocation7 + $0xc8] sm:$0xff]
    %v1851 = vld [vmem:[#allocation7 + $0xd0] sm:$0xff]
    %v1852 = vld [vmem:[#allocation7 + $0xd8] sm:$0xff]
    %v1853 = vld [vmem:[#allocation7 + $0xe0] sm:$0xff]
    %v1854 = vld [vmem:[#allocation7 + $0xe8] sm:$0xff]
    %v1855 = vld [vmem:[#allocation7 + $0xf0] sm:$0xff]
    %v1856 = vld [vmem:[#allocation7 + $0xf8] sm:$0xff]
    %v1857 = vld [vmem:[#allocation7 + $0x100] sm:$0xff]
    %v1858 = vld [vmem:[#allocation7 + $0x108] sm:$0xff]
    %v1859 = vld [vmem:[#allocation7 + $0x110] sm:$0xff]
    %v1860 = vld [vmem:[#allocation7 + $0x118] sm:$0xff]
    %v1861 = vld [vmem:[#allocation7 + $0x120] sm:$0xff]
    %v1862 = vld [vmem:[#allocation7 + $0x128] sm:$0xff]
    %v1863 = vld [vmem:[#allocation7 + $0x130] sm:$0xff]
    %v1864 = vld [vmem:[#allocation7 + $0x138] sm:$0xff]
    %v1865 = vld [vmem:[#allocation7 + $0x140] sm:$0xff]
    %v1866 = vld [vmem:[#allocation7 + $0x148] sm:$0xff]
    %v1867 = vld [vmem:[#allocation7 + $0x150] sm:$0xff]
    %v1868 = vld [vmem:[#allocation7 + $0x158] sm:$0xff]
    %v1869 = vld [vmem:[#allocation7 + $0x160] sm:$0xff]
    %v1870 = vld [vmem:[#allocation7 + $0x168] sm:$0xff]
    %v1871 = vld [vmem:[#allocation7 + $0x170] sm:$0xff]
    %v1872 = vld [vmem:[#allocation7 + $0x178] sm:$0xff]
    %v1873 = vld [vmem:[#allocation7 + $0x180] sm:$0xff]
    %v1874 = vld [vmem:[#allocation7 + $0x188] sm:$0xff]
    %v1875 = vld [vmem:[#allocation7 + $0x190] sm:$0xff]
    %v1876 = vld [vmem:[#allocation7 + $0x198] sm:$0xff]
    %v1877 = vld [vmem:[#allocation7 + $0x1a0] sm:$0xff]
    %v1878 = vld [vmem:[#allocation7 + $0x1a8] sm:$0xff]
    %v1879 = vld [vmem:[#allocation7 + $0x1b0] sm:$0xff]
    %v1880 = vld [vmem:[#allocation7 + $0x1b8] sm:$0xff]
    %v1881 = vld [vmem:[#allocation7 + $0x1c0] sm:$0xff]
    %v1882 = vld [vmem:[#allocation7 + $0x1c8] sm:$0xff]
    %v1883 = vld [vmem:[#allocation7 + $0x1d0] sm:$0xff]
    %v1884 = vld [vmem:[#allocation7 + $0x1d8] sm:$0xff]
    %v1885 = vld [vmem:[#allocation7 + $0x1e0] sm:$0xff]
    %v1886 = vld [vmem:[#allocation7 + $0x1e8] sm:$0xff]
    %v1887 = vld [vmem:[#allocation7 + $0x1f0] sm:$0xff]
    %v1888 = vld [vmem:[#allocation7 + $0x1f8] sm:$0xff]
    %v1890 = vlaneseq
    %v1891 = vshrl.u32 %v1890, 7
    %v1892 = vsub.s32 0, %v1891
    %v1893 = vrot.slane %v1820, %v1892
    %v1894 = vlaneseq
    %v1895 = vshrl.u32 %v1894, 7
    %v1896 = vsub.s32 1, %v1895
    %v1897 = vrot.slane %v1820, %v1896
    %v1964 = vunpack.c.l.b16 %v1825
    %v1965 = vunpack.c.h.b16 %v1825
    %v1966 = vunpack.c.l.b16 %v1826
    %v1967 = vunpack.c.h.b16 %v1826
    %v1968 = vunpack.c.l.b16 %v1827
    %v1969 = vunpack.c.h.b16 %v1827
    %v1970 = vunpack.c.l.b16 %v1828
    %v1971 = vunpack.c.h.b16 %v1828
    %v1972 = vunpack.c.l.b16 %v1829
    %v1973 = vunpack.c.h.b16 %v1829
    %v1974 = vunpack.c.l.b16 %v1830
    %v1975 = vunpack.c.h.b16 %v1830
    %v1976 = vunpack.c.l.b16 %v1831
    %v1977 = vunpack.c.h.b16 %v1831
    %v1978 = vunpack.c.l.b16 %v1832
    %v1979 = vunpack.c.h.b16 %v1832
    %v1980 = vunpack.c.l.b16 %v1833
    %v1981 = vunpack.c.h.b16 %v1833
    %v1982 = vunpack.c.l.b16 %v1834
    %v1983 = vunpack.c.h.b16 %v1834
    %v1984 = vunpack.c.l.b16 %v1835
    %v1985 = vunpack.c.h.b16 %v1835
    %v1986 = vunpack.c.l.b16 %v1836
    %v1987 = vunpack.c.h.b16 %v1836
    %v1988 = vunpack.c.l.b16 %v1837
    %v1989 = vunpack.c.h.b16 %v1837
    %v1990 = vunpack.c.l.b16 %v1838
    %v1991 = vunpack.c.h.b16 %v1838
    %v1992 = vunpack.c.l.b16 %v1839
    %v1993 = vunpack.c.h.b16 %v1839
    %v1994 = vunpack.c.l.b16 %v1840
    %v1995 = vunpack.c.h.b16 %v1840
    %v1996 = vunpack.c.l.b16 %v1841
    %v1997 = vunpack.c.h.b16 %v1841
    %v1998 = vunpack.c.l.b16 %v1842
    %v1999 = vunpack.c.h.b16 %v1842
    %v2000 = vunpack.c.l.b16 %v1843
    %v2001 = vunpack.c.h.b16 %v1843
    %v2002 = vunpack.c.l.b16 %v1844
    %v2003 = vunpack.c.h.b16 %v1844
    %v2004 = vunpack.c.l.b16 %v1845
    %v2005 = vunpack.c.h.b16 %v1845
    %v2006 = vunpack.c.l.b16 %v1846
    %v2007 = vunpack.c.h.b16 %v1846
    %v2008 = vunpack.c.l.b16 %v1847
    %v2009 = vunpack.c.h.b16 %v1847
    %v2010 = vunpack.c.l.b16 %v1848
    %v2011 = vunpack.c.h.b16 %v1848
    %v2012 = vunpack.c.l.b16 %v1849
    %v2013 = vunpack.c.h.b16 %v1849
    %v2014 = vunpack.c.l.b16 %v1850
    %v2015 = vunpack.c.h.b16 %v1850
    %v2016 = vunpack.c.l.b16 %v1851
    %v2017 = vunpack.c.h.b16 %v1851
    %v2018 = vunpack.c.l.b16 %v1852
    %v2019 = vunpack.c.h.b16 %v1852
    %v2020 = vunpack.c.l.b16 %v1853
    %v2021 = vunpack.c.h.b16 %v1853
    %v2022 = vunpack.c.l.b16 %v1854
    %v2023 = vunpack.c.h.b16 %v1854
    %v2024 = vunpack.c.l.b16 %v1855
    %v2025 = vunpack.c.h.b16 %v1855
    %v2026 = vunpack.c.l.b16 %v1856
    %v2027 = vunpack.c.h.b16 %v1856
    %v2028 = vunpack.c.l.b16 %v1857
    %v2029 = vunpack.c.h.b16 %v1857
    %v2030 = vunpack.c.l.b16 %v1858
    %v2031 = vunpack.c.h.b16 %v1858
    %v2032 = vunpack.c.l.b16 %v1859
    %v2033 = vunpack.c.h.b16 %v1859
    %v2034 = vunpack.c.l.b16 %v1860
    %v2035 = vunpack.c.h.b16 %v1860
    %v2036 = vunpack.c.l.b16 %v1861
    %v2037 = vunpack.c.h.b16 %v1861
    %v2038 = vunpack.c.l.b16 %v1862
    %v2039 = vunpack.c.h.b16 %v1862
    %v2040 = vunpack.c.l.b16 %v1863
    %v2041 = vunpack.c.h.b16 %v1863
    %v2042 = vunpack.c.l.b16 %v1864
    %v2043 = vunpack.c.h.b16 %v1864
    %v2044 = vunpack.c.l.b16 %v1865
    %v2045 = vunpack.c.h.b16 %v1865
    %v2046 = vunpack.c.l.b16 %v1866
    %v2047 = vunpack.c.h.b16 %v1866
    %v2048 = vunpack.c.l.b16 %v1867
    %v2049 = vunpack.c.h.b16 %v1867
    %v2050 = vunpack.c.l.b16 %v1868
    %v2051 = vunpack.c.h.b16 %v1868
    %v2052 = vunpack.c.l.b16 %v1869
    %v2053 = vunpack.c.h.b16 %v1869
    %v2054 = vunpack.c.l.b16 %v1870
    %v2055 = vunpack.c.h.b16 %v1870
    %v2056 = vunpack.c.l.b16 %v1871
    %v2057 = vunpack.c.h.b16 %v1871
    %v2058 = vunpack.c.l.b16 %v1872
    %v2059 = vunpack.c.h.b16 %v1872
    %v2060 = vunpack.c.l.b16 %v1873
    %v2061 = vunpack.c.h.b16 %v1873
    %v2062 = vunpack.c.l.b16 %v1874
    %v2063 = vunpack.c.h.b16 %v1874
    %v2064 = vunpack.c.l.b16 %v1875
    %v2065 = vunpack.c.h.b16 %v1875
    %v2066 = vunpack.c.l.b16 %v1876
    %v2067 = vunpack.c.h.b16 %v1876
    %v2068 = vunpack.c.l.b16 %v1877
    %v2069 = vunpack.c.h.b16 %v1877
    %v2070 = vunpack.c.l.b16 %v1878
    %v2071 = vunpack.c.h.b16 %v1878
    %v2072 = vunpack.c.l.b16 %v1879
    %v2073 = vunpack.c.h.b16 %v1879
    %v2074 = vunpack.c.l.b16 %v1880
    %v2075 = vunpack.c.h.b16 %v1880
    %v2076 = vunpack.c.l.b16 %v1881
    %v2077 = vunpack.c.h.b16 %v1881
    %v2078 = vunpack.c.l.b16 %v1882
    %v2079 = vunpack.c.h.b16 %v1882
    %v2080 = vunpack.c.l.b16 %v1883
    %v2081 = vunpack.c.h.b16 %v1883
    %v2082 = vunpack.c.l.b16 %v1884
    %v2083 = vunpack.c.h.b16 %v1884
    %v2084 = vunpack.c.l.b16 %v1885
    %v2085 = vunpack.c.h.b16 %v1885
    %v2086 = vunpack.c.l.b16 %v1886
    %v2087 = vunpack.c.h.b16 %v1886
    %v2088 = vunpack.c.l.b16 %v1887
    %v2089 = vunpack.c.h.b16 %v1887
    %v2090 = vunpack.c.l.b16 %v1888
    %v2091 = vunpack.c.h.b16 %v1888
    %v2092 = vpack.c.b16 %v1966, %v1964
    %v2093 = vpack.c.b16 %v1967, %v1965
    %v2094 = vpack.c.b16 %v1970, %v1968
    %v2095 = vpack.c.b16 %v1971, %v1969
    %v2096 = vpack.c.b16 %v1974, %v1972
    %v2097 = vpack.c.b16 %v1975, %v1973
    %v2098 = vpack.c.b16 %v1978, %v1976
    %v2099 = vpack.c.b16 %v1979, %v1977
    %v2100 = vpack.c.b16 %v1982, %v1980
    %v2101 = vpack.c.b16 %v1983, %v1981
    %v2102 = vpack.c.b16 %v1986, %v1984
    %v2103 = vpack.c.b16 %v1987, %v1985
    %v2104 = vpack.c.b16 %v1990, %v1988
    %v2105 = vpack.c.b16 %v1991, %v1989
    %v2106 = vpack.c.b16 %v1994, %v1992
    %v2107 = vpack.c.b16 %v1995, %v1993
    %v2108 = vpack.c.b16 %v1998, %v1996
    %v2109 = vpack.c.b16 %v1999, %v1997
    %v2110 = vpack.c.b16 %v2002, %v2000
    %v2111 = vpack.c.b16 %v2003, %v2001
    %v2112 = vpack.c.b16 %v2006, %v2004
    %v2113 = vpack.c.b16 %v2007, %v2005
    %v2114 = vpack.c.b16 %v2010, %v2008
    %v2115 = vpack.c.b16 %v2011, %v2009
    %v2116 = vpack.c.b16 %v2014, %v2012
    %v2117 = vpack.c.b16 %v2015, %v2013
    %v2118 = vpack.c.b16 %v2018, %v2016
    %v2119 = vpack.c.b16 %v2019, %v2017
    %v2120 = vpack.c.b16 %v2022, %v2020
    %v2121 = vpack.c.b16 %v2023, %v2021
    %v2122 = vpack.c.b16 %v2026, %v2024
    %v2123 = vpack.c.b16 %v2027, %v2025
    %v2124 = vpack.c.b16 %v2030, %v2028
    %v2125 = vpack.c.b16 %v2031, %v2029
    %v2126 = vpack.c.b16 %v2034, %v2032
    %v2127 = vpack.c.b16 %v2035, %v2033
    %v2128 = vpack.c.b16 %v2038, %v2036
    %v2129 = vpack.c.b16 %v2039, %v2037
    %v2130 = vpack.c.b16 %v2042, %v2040
    %v2131 = vpack.c.b16 %v2043, %v2041
    %v2132 = vpack.c.b16 %v2046, %v2044
    %v2133 = vpack.c.b16 %v2047, %v2045
    %v2134 = vpack.c.b16 %v2050, %v2048
    %v2135 = vpack.c.b16 %v2051, %v2049
    %v2136 = vpack.c.b16 %v2054, %v2052
    %v2137 = vpack.c.b16 %v2055, %v2053
    %v2138 = vpack.c.b16 %v2058, %v2056
    %v2139 = vpack.c.b16 %v2059, %v2057
    %v2140 = vpack.c.b16 %v2062, %v2060
    %v2141 = vpack.c.b16 %v2063, %v2061
    %v2142 = vpack.c.b16 %v2066, %v2064
    %v2143 = vpack.c.b16 %v2067, %v2065
    %v2144 = vpack.c.b16 %v2070, %v2068
    %v2145 = vpack.c.b16 %v2071, %v2069
    %v2146 = vpack.c.b16 %v2074, %v2072
    %v2147 = vpack.c.b16 %v2075, %v2073
    %v2148 = vpack.c.b16 %v2078, %v2076
    %v2149 = vpack.c.b16 %v2079, %v2077
    %v2150 = vpack.c.b16 %v2082, %v2080
    %v2151 = vpack.c.b16 %v2083, %v2081
    %v2152 = vpack.c.b16 %v2086, %v2084
    %v2153 = vpack.c.b16 %v2087, %v2085
    %v2154 = vpack.c.b16 %v2090, %v2088
    %v2155 = vpack.c.b16 %v2091, %v2089
    %2220 = vmatprep.subr.bf16.mxu0 %v2093
    %2221 = vmatpush1.bf16.msra.mxu0 %v2092
    %2222 = vmatprep.subr.bf16.mxu0 %v2095
    %2223 = vmatpush1.bf16.msra.mxu0 %v2094
    %2224 = vmatprep.subr.bf16.mxu0 %v2097
    %2225 = vmatpush1.bf16.msra.mxu0 %v2096
    %2226 = vmatprep.subr.bf16.mxu0 %v2099
    %2227 = vmatpush1.bf16.msra.mxu0 %v2098
    %2228 = vmatprep.subr.bf16.mxu0 %v2101
    %2229 = vmatpush1.bf16.msra.mxu0 %v2100
    %2230 = vmatprep.subr.bf16.mxu0 %v2103
    %2231 = vmatpush1.bf16.msra.mxu0 %v2102
    %2232 = vmatprep.subr.bf16.mxu0 %v2105
    %2233 = vmatpush1.bf16.msra.mxu0 %v2104
    %2234 = vmatprep.subr.bf16.mxu0 %v2107
    %2235 = vmatpush1.bf16.msra.mxu0 %v2106
    %2236 = vmatprep.subr.bf16.mxu0 %v2109
    %2237 = vmatpush1.bf16.msra.mxu0 %v2108
    %2238 = vmatprep.subr.bf16.mxu0 %v2111
    %2239 = vmatpush1.bf16.msra.mxu0 %v2110
    %2240 = vmatprep.subr.bf16.mxu0 %v2113
    %2241 = vmatpush1.bf16.msra.mxu0 %v2112
    %2242 = vmatprep.subr.bf16.mxu0 %v2115
    %2243 = vmatpush1.bf16.msra.mxu0 %v2114
    %2244 = vmatprep.subr.bf16.mxu0 %v2117
    %2245 = vmatpush1.bf16.msra.mxu0 %v2116
    %2246 = vmatprep.subr.bf16.mxu0 %v2119
    %2247 = vmatpush1.bf16.msra.mxu0 %v2118
    %2248 = vmatprep.subr.bf16.mxu0 %v2121
    %2249 = vmatpush1.bf16.msra.mxu0 %v2120
    %2250 = vmatprep.subr.bf16.mxu0 %v2123
    %2251 = vmatpush1.bf16.msra.mxu0 %v2122
    %2252 = vmatprep.mubr.bf16.mxu0 %v1822
    %2253 = vmatmul.mubr.bf16.gmra.mrb[0].mxu0 %v1821
    %v2254 = vpop.f32.mrb[0].mxu0
    %v2255 = vadd.f32 %v1893, %v2254
    %v2256 = vpop.f32.mrb[0].mxu0
    %v2257 = vadd.f32 %v1897, %v2256
    %v2258 = vpop.f32.mrb[0].mxu0
    %v2259 = vpop.f32.mrb[0].mxu0
    %2260 = vdwg.mxu0
    %2261 = vmatprep.subr.bf16.mxu0 %v2125
    %2262 = vmatpush1.bf16.msra.mxu0 %v2124
    %2263 = vmatprep.subr.bf16.mxu0 %v2127
    %2264 = vmatpush1.bf16.msra.mxu0 %v2126
    %2265 = vmatprep.subr.bf16.mxu0 %v2129
    %2266 = vmatpush1.bf16.msra.mxu0 %v2128
    %2267 = vmatprep.subr.bf16.mxu0 %v2131
    %2268 = vmatpush1.bf16.msra.mxu0 %v2130
    %2269 = vmatprep.subr.bf16.mxu0 %v2133
    %2270 = vmatpush1.bf16.msra.mxu0 %v2132
    %2271 = vmatprep.subr.bf16.mxu0 %v2135
    %2272 = vmatpush1.bf16.msra.mxu0 %v2134
    %2273 = vmatprep.subr.bf16.mxu0 %v2137
    %2274 = vmatpush1.bf16.msra.mxu0 %v2136
    %2275 = vmatprep.subr.bf16.mxu0 %v2139
    %2276 = vmatpush1.bf16.msra.mxu0 %v2138
    %2277 = vmatprep.subr.bf16.mxu0 %v2141
    %2278 = vmatpush1.bf16.msra.mxu0 %v2140
    %2279 = vmatprep.subr.bf16.mxu0 %v2143
    %2280 = vmatpush1.bf16.msra.mxu0 %v2142
    %2281 = vmatprep.subr.bf16.mxu0 %v2145
    %2282 = vmatpush1.bf16.msra.mxu0 %v2144
    %2283 = vmatprep.subr.bf16.mxu0 %v2147
    %2284 = vmatpush1.bf16.msra.mxu0 %v2146
    %2285 = vmatprep.subr.bf16.mxu0 %v2149
    %2286 = vmatpush1.bf16.msra.mxu0 %v2148
    %2287 = vmatprep.subr.bf16.mxu0 %v2151
    %2288 = vmatpush1.bf16.msra.mxu0 %v2150
    %2289 = vmatprep.subr.bf16.mxu0 %v2153
    %2290 = vmatpush1.bf16.msra.mxu0 %v2152
    %2291 = vmatprep.subr.bf16.mxu0 %v2155
    %2292 = vmatpush1.bf16.msra.mxu0 %v2154
    %2293 = vmatprep.mubr.bf16.mxu0 %v1824
    %2294 = vmatmul.mubr.bf16.gmra.mrb[0].mxu0 %v1823
    %v2295 = vpop.f32.mrb[0].mxu0
    %v2296 = vadd.f32 %v2255, %v2295
    %v2297 = vpop.f32.mrb[0].mxu0
    %v2298 = vadd.f32 %v2257, %v2297
    %v2299 = vpop.f32.mrb[0].mxu0
    %v2300 = vpop.f32.mrb[0].mxu0
    %2301 = vdwg.mxu0
    %v2302 = vmax.f32 %v2296, 0.0
    %v2303 = vmax.f32 %v2298, 0.0
    %v2304 = vld [vmem:[%s6 + $0x6] sm:$0x1]
    %v2305 = vpack.c.bf16 %v2302, %v2302
    %v2306 = vpack.c.bf16 %v2303, %v2303
    %v2307 = vld [vmem:[#allocation8] sm:$0xf]
    %v2308 = vld [vmem:[#allocation8 + $0x4] sm:$0xf]
    %v2309 = vld [vmem:[#allocation8 + $0x8] sm:$0xf]
    %v2310 = vld [vmem:[#allocation8 + $0xc] sm:$0xf]
    %v2311 = vld [vmem:[#allocation8 + $0x10] sm:$0xf]
    %v2312 = vld [vmem:[#allocation8 + $0x14] sm:$0xf]
    %v2313 = vld [vmem:[#allocation8 + $0x18] sm:$0xf]
    %v2314 = vld [vmem:[#allocation8 + $0x1c] sm:$0xf]
    %v2315 = vld [vmem:[#allocation8 + $0x20] sm:$0xf]
    %v2316 = vld [vmem:[#allocation8 + $0x24] sm:$0xf]
    %v2317 = vld [vmem:[#allocation8 + $0x28] sm:$0xf]
    %v2318 = vld [vmem:[#allocation8 + $0x2c] sm:$0xf]
    %v2319 = vld [vmem:[#allocation8 + $0x30] sm:$0xf]
    %v2320 = vld [vmem:[#allocation8 + $0x34] sm:$0xf]
    %v2321 = vld [vmem:[#allocation8 + $0x38] sm:$0xf]
    %v2322 = vld [vmem:[#allocation8 + $0x3c] sm:$0xf]
    %v2323 = vld [vmem:[#allocation8 + $0x40] sm:$0xf]
    %v2324 = vld [vmem:[#allocation8 + $0x44] sm:$0xf]
    %v2325 = vld [vmem:[#allocation8 + $0x48] sm:$0xf]
    %v2326 = vld [vmem:[#allocation8 + $0x4c] sm:$0xf]
    %v2327 = vld [vmem:[#allocation8 + $0x50] sm:$0xf]
    %v2328 = vld [vmem:[#allocation8 + $0x54] sm:$0xf]
    %v2329 = vld [vmem:[#allocation8 + $0x58] sm:$0xf]
    %v2330 = vld [vmem:[#allocation8 + $0x5c] sm:$0xf]
    %v2331 = vld [vmem:[#allocation8 + $0x60] sm:$0xf]
    %v2332 = vld [vmem:[#allocation8 + $0x64] sm:$0xf]
    %v2333 = vld [vmem:[#allocation8 + $0x68] sm:$0xf]
    %v2334 = vld [vmem:[#allocation8 + $0x6c] sm:$0xf]
    %v2335 = vld [vmem:[#allocation8 + $0x70] sm:$0xf]
    %v2336 = vld [vmem:[#allocation8 + $0x74] sm:$0xf]
    %v2337 = vld [vmem:[#allocation8 + $0x78] sm:$0xf]
    %v2338 = vld [vmem:[#allocation8 + $0x7c] sm:$0xf]
    %v2340 = vlaneseq
    %v2341 = vshrl.u32 %v2340, 7
    %v2342 = vsub.s32 0, %v2341
    %v2343 = vrot.slane %v2304, %v2342
    %v2377 = vunpack.c.l.b16 %v2307
    %v2378 = vunpack.c.l.b16 %v2308
    %v2379 = vunpack.c.l.b16 %v2309
    %v2380 = vunpack.c.l.b16 %v2310
    %v2381 = vunpack.c.l.b16 %v2311
    %v2382 = vunpack.c.l.b16 %v2312
    %v2383 = vunpack.c.l.b16 %v2313
    %v2384 = vunpack.c.l.b16 %v2314
    %v2385 = vunpack.c.l.b16 %v2315
    %v2386 = vunpack.c.l.b16 %v2316
    %v2387 = vunpack.c.l.b16 %v2317
    %v2388 = vunpack.c.l.b16 %v2318
    %v2389 = vunpack.c.l.b16 %v2319
    %v2390 = vunpack.c.l.b16 %v2320
    %v2391 = vunpack.c.l.b16 %v2321
    %v2392 = vunpack.c.l.b16 %v2322
    %v2393 = vunpack.c.l.b16 %v2323
    %v2394 = vunpack.c.l.b16 %v2324
    %v2395 = vunpack.c.l.b16 %v2325
    %v2396 = vunpack.c.l.b16 %v2326
    %v2397 = vunpack.c.l.b16 %v2327
    %v2398 = vunpack.c.l.b16 %v2328
    %v2399 = vunpack.c.l.b16 %v2329
    %v2400 = vunpack.c.l.b16 %v2330
    %v2401 = vunpack.c.l.b16 %v2331
    %v2402 = vunpack.c.l.b16 %v2332
    %v2403 = vunpack.c.l.b16 %v2333
    %v2404 = vunpack.c.l.b16 %v2334
    %v2405 = vunpack.c.l.b16 %v2335
    %v2406 = vunpack.c.l.b16 %v2336
    %v2407 = vunpack.c.l.b16 %v2337
    %v2408 = vunpack.c.l.b16 %v2338
    %v2409 = vpack.c.b16 %v2378, %v2377
    %v2410 = vpack.c.b16 %v2380, %v2379
    %v2411 = vpack.c.b16 %v2382, %v2381
    %v2412 = vpack.c.b16 %v2384, %v2383
    %v2413 = vpack.c.b16 %v2386, %v2385
    %v2414 = vpack.c.b16 %v2388, %v2387
    %v2415 = vpack.c.b16 %v2390, %v2389
    %v2416 = vpack.c.b16 %v2392, %v2391
    %v2417 = vpack.c.b16 %v2394, %v2393
    %v2418 = vpack.c.b16 %v2396, %v2395
    %v2419 = vpack.c.b16 %v2398, %v2397
    %v2420 = vpack.c.b16 %v2400, %v2399
    %v2421 = vpack.c.b16 %v2402, %v2401
    %v2422 = vpack.c.b16 %v2404, %v2403
    %v2423 = vpack.c.b16 %v2406, %v2405
    %v2424 = vpack.c.b16 %v2408, %v2407
    %2441 = vmatprep.subr.bf16.mxu0 0
    %2442 = vmatpush1.bf16.msra.mxu0 %v2409
    %2443 = vmatprep.subr.bf16.mxu0 0
    %2444 = vmatpush1.bf16.msra.mxu0 %v2410
    %2445 = vmatprep.subr.bf16.mxu0 0
    %2446 = vmatpush1.bf16.msra.mxu0 %v2411
    %2447 = vmatprep.subr.bf16.mxu0 0
    %2448 = vmatpush1.bf16.msra.mxu0 %v2412
    %2449 = vmatprep.subr.bf16.mxu0 0
    %2450 = vmatpush1.bf16.msra.mxu0 %v2413
    %2451 = vmatprep.subr.bf16.mxu0 0
    %2452 = vmatpush1.bf16.msra.mxu0 %v2414
    %2453 = vmatprep.subr.bf16.mxu0 0
    %2454 = vmatpush1.bf16.msra.mxu0 %v2415
    %2455 = vmatprep.subr.bf16.mxu0 0
    %2456 = vmatpush1.bf16.msra.mxu0 %v2416
    %2457 = vmatprep.subr.bf16.mxu0 0
    %2458 = vmatpush1.bf16.msra.mxu0 %v2417
    %2459 = vmatprep.subr.bf16.mxu0 0
    %2460 = vmatpush1.bf16.msra.mxu0 %v2418
    %2461 = vmatprep.subr.bf16.mxu0 0
    %2462 = vmatpush1.bf16.msra.mxu0 %v2419
    %2463 = vmatprep.subr.bf16.mxu0 0
    %2464 = vmatpush1.bf16.msra.mxu0 %v2420
    %2465 = vmatprep.subr.bf16.mxu0 0
    %2466 = vmatpush1.bf16.msra.mxu0 %v2421
    %2467 = vmatprep.subr.bf16.mxu0 0
    %2468 = vmatpush1.bf16.msra.mxu0 %v2422
    %2469 = vmatprep.subr.bf16.mxu0 0
    %2470 = vmatpush1.bf16.msra.mxu0 %v2423
    %2471 = vmatprep.subr.bf16.mxu0 0
    %2472 = vmatpush1.bf16.msra.mxu0 %v2424
    %2473 = vmatprep.mubr.bf16.mxu0 %v2306
    %2474 = vmatmul.mubr.bf16.gmra.mrb[0].mxu0 %v2305
    %v2475 = vpop.f32.mrb[0].mxu0
    %v2476 = vadd.f32 %v2343, %v2475
    %v2477 = vpop.f32.mrb[0].mxu0
    %v2478 = vpop.f32.mrb[0].mxu0
    %v2479 = vpop.f32.mrb[0].mxu0
    %2480 = vdwg.mxu0
    %v2481 = vmax.f32 %v2476, 0.0
    %v2482 = vld [vmem:[%s6 + $0x7] sm:$0x1]
    %v2483 = vpack.c.bf16 %v2481, %v2481
    %v2484 = vld [vmem:[#allocation10] sm:$0xf]
    %v2485 = vld [vmem:[#allocation10 + $0x4] sm:$0xf]
    %v2486 = vld [vmem:[#allocation10 + $0x8] sm:$0xf]
    %v2487 = vld [vmem:[#allocation10 + $0xc] sm:$0xf]
    %v2488 = vld [vmem:[#allocation10 + $0x10] sm:$0xf]
    %v2489 = vld [vmem:[#allocation10 + $0x14] sm:$0xf]
    %v2490 = vld [vmem:[#allocation10 + $0x18] sm:$0xf]
    %v2491 = vld [vmem:[#allocation10 + $0x1c] sm:$0xf]
    %v2492 = vld [vmem:[#allocation10 + $0x20] sm:$0xf]
    %v2493 = vld [vmem:[#allocation10 + $0x24] sm:$0xf]
    %v2494 = vld [vmem:[#allocation10 + $0x28] sm:$0xf]
    %v2495 = vld [vmem:[#allocation10 + $0x2c] sm:$0xf]
    %v2496 = vld [vmem:[#allocation10 + $0x30] sm:$0xf]
    %v2497 = vld [vmem:[#allocation10 + $0x34] sm:$0xf]
    %v2498 = vld [vmem:[#allocation10 + $0x38] sm:$0xf]
    %v2499 = vld [vmem:[#allocation10 + $0x3c] sm:$0xf]
    %v2501 = vlaneseq
    %v2502 = vshrl.u32 %v2501, 7
    %v2503 = vsub.s32 0, %v2502
    %v2504 = vrot.slane %v2482, %v2503
    %v2522 = vunpack.c.l.b16 %v2484
    %v2523 = vunpack.c.l.b16 %v2485
    %v2524 = vunpack.c.l.b16 %v2486
    %v2525 = vunpack.c.l.b16 %v2487
    %v2526 = vunpack.c.l.b16 %v2488
    %v2527 = vunpack.c.l.b16 %v2489
    %v2528 = vunpack.c.l.b16 %v2490
    %v2529 = vunpack.c.l.b16 %v2491
    %v2530 = vunpack.c.l.b16 %v2492
    %v2531 = vunpack.c.l.b16 %v2493
    %v2532 = vunpack.c.l.b16 %v2494
    %v2533 = vunpack.c.l.b16 %v2495
    %v2534 = vunpack.c.l.b16 %v2496
    %v2535 = vunpack.c.l.b16 %v2497
    %v2536 = vunpack.c.l.b16 %v2498
    %v2537 = vunpack.c.l.b16 %v2499
    %v2538 = vpack.c.b16 %v2523, %v2522
    %v2539 = vpack.c.b16 %v2525, %v2524
    %v2540 = vpack.c.b16 %v2527, %v2526
    %v2541 = vpack.c.b16 %v2529, %v2528
    %v2542 = vpack.c.b16 %v2531, %v2530
    %v2543 = vpack.c.b16 %v2533, %v2532
    %v2544 = vpack.c.b16 %v2535, %v2534
    %v2545 = vpack.c.b16 %v2537, %v2536
    %2554 = vmatprep.subr.bf16.mxu0 0
    %2555 = vmatpush1.bf16.msra.mxu0 %v2538
    %2556 = vmatprep.subr.bf16.mxu0 0
    %2557 = vmatpush1.bf16.msra.mxu0 %v2539
    %2558 = vmatprep.subr.bf16.mxu0 0
    %2559 = vmatpush1.bf16.msra.mxu0 %v2540
    %2560 = vmatprep.subr.bf16.mxu0 0
    %2561 = vmatpush1.bf16.msra.mxu0 %v2541
    %2562 = vmatprep.subr.bf16.mxu0 0
    %2563 = vmatpush1.bf16.msra.mxu0 %v2542
    %2564 = vmatprep.subr.bf16.mxu0 0
    %2565 = vmatpush1.bf16.msra.mxu0 %v2543
    %2566 = vmatprep.subr.bf16.mxu0 0
    %2567 = vmatpush1.bf16.msra.mxu0 %v2544
    %2568 = vmatprep.subr.bf16.mxu0 0
    %2569 = vmatpush1.bf16.msra.mxu0 %v2545
    %2570 = vmatprep.subr.bf16.mxu0 0
    %2571 = vmatpush1.bf16.msra.mxu0 0
    %2572 = vmatprep.subr.bf16.mxu0 0
    %2573 = vmatpush1.bf16.msra.mxu0 0
    %2574 = vmatprep.subr.bf16.mxu0 0
    %2575 = vmatpush1.bf16.msra.mxu0 0
    %2576 = vmatprep.subr.bf16.mxu0 0
    %2577 = vmatpush1.bf16.msra.mxu0 0
    %2578 = vmatprep.subr.bf16.mxu0 0
    %2579 = vmatpush1.bf16.msra.mxu0 0
    %2580 = vmatprep.subr.bf16.mxu0 0
    %2581 = vmatpush1.bf16.msra.mxu0 0
    %2582 = vmatprep.subr.bf16.mxu0 0
    %2583 = vmatpush1.bf16.msra.mxu0 0
    %2584 = vmatprep.subr.bf16.mxu0 0
    %2585 = vmatpush1.bf16.msra.mxu0 0
    %2586 = vmatprep.mubr.bf16.mxu0 0
    %2587 = vmatmul.mubr.bf16.gmra.mrb[0].mxu0 %v2483
    %v2588 = vpop.f32.mrb[0].mxu0
    %v2589 = vadd.f32 %v2504, %v2588
    %v2590 = vpop.f32.mrb[0].mxu0
    %v2591 = vpop.f32.mrb[0].mxu0
    %v2592 = vpop.f32.mrb[0].mxu0
    %2593 = vdwg.mxu0
    %v2594 = vmax.f32 %v2589, 0.0
    %v2595 = vld [vmem:[%s6 + $0x8] sm:$0x1]
    %v2596 = vpack.c.bf16 %v2594, %v2594
    %v2597 = vld [vmem:[#allocation11] sm:$0xf]
    %v2598 = vld [vmem:[#allocation11 + $0x4] sm:$0xf]
    %v2599 = vld [vmem:[#allocation11 + $0x8] sm:$0xf]
    %v2600 = vld [vmem:[#allocation11 + $0xc] sm:$0xf]
    %v2601 = vld [vmem:[#allocation11 + $0x10] sm:$0xf]
    %v2602 = vld [vmem:[#allocation11 + $0x14] sm:$0xf]
    %v2603 = vld [vmem:[#allocation11 + $0x18] sm:$0xf]
    %v2604 = vld [vmem:[#allocation11 + $0x1c] sm:$0xf]
    %v2605 = vld [vmem:[#allocation11 + $0x20] sm:$0xf]
    %v2606 = vld [vmem:[#allocation11 + $0x24] sm:$0xf]
    %v2607 = vld [vmem:[#allocation11 + $0x28] sm:$0xf]
    %v2608 = vld [vmem:[#allocation11 + $0x2c] sm:$0xf]
    %v2609 = vld [vmem:[#allocation11 + $0x30] sm:$0xf]
    %v2610 = vld [vmem:[#allocation11 + $0x34] sm:$0xf]
    %v2611 = vld [vmem:[#allocation11 + $0x38] sm:$0xf]
    %v2612 = vld [vmem:[#allocation11 + $0x3c] sm:$0xf]
    %v2614 = vlaneseq
    %v2615 = vshrl.u32 %v2614, 7
    %v2616 = vsub.s32 0, %v2615
    %v2617 = vrot.slane %v2595, %v2616
    %v2635 = vunpack.c.l.b16 %v2597
    %v2636 = vunpack.c.l.b16 %v2598
    %v2637 = vunpack.c.l.b16 %v2599
    %v2638 = vunpack.c.l.b16 %v2600
    %v2639 = vunpack.c.l.b16 %v2601
    %v2640 = vunpack.c.l.b16 %v2602
    %v2641 = vunpack.c.l.b16 %v2603
    %v2642 = vunpack.c.l.b16 %v2604
    %v2643 = vunpack.c.l.b16 %v2605
    %v2644 = vunpack.c.l.b16 %v2606
    %v2645 = vunpack.c.l.b16 %v2607
    %v2646 = vunpack.c.l.b16 %v2608
    %v2647 = vunpack.c.l.b16 %v2609
    %v2648 = vunpack.c.l.b16 %v2610
    %v2649 = vunpack.c.l.b16 %v2611
    %v2650 = vunpack.c.l.b16 %v2612
    %v2651 = vpack.c.b16 %v2636, %v2635
    %v2652 = vpack.c.b16 %v2638, %v2637
    %v2653 = vpack.c.b16 %v2640, %v2639
    %v2654 = vpack.c.b16 %v2642, %v2641
    %v2655 = vpack.c.b16 %v2644, %v2643
    %v2656 = vpack.c.b16 %v2646, %v2645
    %v2657 = vpack.c.b16 %v2648, %v2647
    %v2658 = vpack.c.b16 %v2650, %v2649
    %2667 = vmatprep.subr.bf16.mxu0 0
    %2668 = vmatpush1.bf16.msra.mxu0 %v2651
    %2669 = vmatprep.subr.bf16.mxu0 0
    %2670 = vmatpush1.bf16.msra.mxu0 %v2652
    %2671 = vmatprep.subr.bf16.mxu0 0
    %2672 = vmatpush1.bf16.msra.mxu0 %v2653
    %2673 = vmatprep.subr.bf16.mxu0 0
    %2674 = vmatpush1.bf16.msra.mxu0 %v2654
    %2675 = vmatprep.subr.bf16.mxu0 0
    %2676 = vmatpush1.bf16.msra.mxu0 %v2655
    %2677 = vmatprep.subr.bf16.mxu0 0
    %2678 = vmatpush1.bf16.msra.mxu0 %v2656
    %2679 = vmatprep.subr.bf16.mxu0 0
    %2680 = vmatpush1.bf16.msra.mxu0 %v2657
    %2681 = vmatprep.subr.bf16.mxu0 0
    %2682 = vmatpush1.bf16.msra.mxu0 %v2658
    %2683 = vmatprep.subr.bf16.mxu0 0
    %2684 = vmatpush1.bf16.msra.mxu0 0
    %2685 = vmatprep.subr.bf16.mxu0 0
    %2686 = vmatpush1.bf16.msra.mxu0 0
    %2687 = vmatprep.subr.bf16.mxu0 0
    %2688 = vmatpush1.bf16.msra.mxu0 0
    %2689 = vmatprep.subr.bf16.mxu0 0
    %2690 = vmatpush1.bf16.msra.mxu0 0
    %2691 = vmatprep.subr.bf16.mxu0 0
    %2692 = vmatpush1.bf16.msra.mxu0 0
    %2693 = vmatprep.subr.bf16.mxu0 0
    %2694 = vmatpush1.bf16.msra.mxu0 0
    %2695 = vmatprep.subr.bf16.mxu0 0
    %2696 = vmatpush1.bf16.msra.mxu0 0
    %2697 = vmatprep.subr.bf16.mxu0 0
    %2698 = vmatpush1.bf16.msra.mxu0 0
    %2699 = vmatprep.mubr.bf16.mxu0 0
    %2700 = vmatmul.mubr.bf16.gmra.mrb[0].mxu0 %v2596
    %v2701 = vpop.f32.mrb[0].mxu0
    %v2702 = vadd.f32 %v2617, %v2701
    %v2703 = vpop.f32.mrb[0].mxu0
    %v2704 = vpop.f32.mrb[0].mxu0
    %v2705 = vpop.f32.mrb[0].mxu0
    %2706 = vdwg.mxu0
    %2707 = vst [vmem:[#allocation13] sm:$0xff] %v2702
    // Predicated region
    $region54: #{tpu_custom_call.1} parent=1 // pred_check
      _
    $region55: #{tpu_custom_call.1} parent=1 // pred_check_branch
      %2709 = sbr.rel (0) target = $region57
    $region56: #{tpu_custom_call.1} parent=1 // pred_region
      %s2711 = ssub.s32 128, 128
      %2712 = vsyncadd [#allocation4], %s2711
      %s2714 = sshll.u32 [#allocation13], 4
      %s2715 = int_to_ptr.vmem [resolvable:$true] %s2714
      %2717 = dma.vmem_to_hbm [thread:$0]  %s2715, 128, %s7, [#allocation4]
    $region57: #{tpu_custom_call.1} parent=1 // pred_fallthru
      _
    // Predicated region
    $region58: #{tpu_custom_call.1} parent=1 // pred_check
      _
    $region59: #{tpu_custom_call.1} parent=1 // pred_check_branch
      %2719 = sbr.rel (0) target = $region61
    $region60: #{tpu_custom_call.1} parent=1 // pred_region
      %2720 = dma.done [#allocation4], 128
    $region61: #{tpu_custom_call.1} parent=1 // pred_fallthru
      _
    %2721 = vsyncpa [#allocation3], 1
    %2722 = vsyncpa [#allocation6], 1
    %2723 = vsyncpa [#allocation9], 1
    %2724 = vsyncpa [#allocation12], 1
    %2725 = vsyncpa [#allocation4], 1

</llo_original>
